<compile_context>
chip_gen: v6e
topology: v6e:2x2x1
jax: 0.10.0
libtpu: 0.0.40
codegen_flags: <defaults>
</compile_context>

<pallas_src>
import functools
import math

import jax
import jax.numpy as jnp
from jax.experimental import pallas as pl
from jax.experimental.pallas import tpu as pltpu


def _round_up(a, b):
    return -(-a // b) * b


def _lcm(a, b):
    return a * b // math.gcd(a, b)


def _moving_avg_kernel(a_ref, first_ref, last_ref, cur_ref, lh_ref, rh_ref,
                       o_ref, win_ref, *, l_total, k, s, tl, tls, hp, h, sub,
                       subw):
    """One (batch, time-tile) grid step.

    a_ref    : (sub, subw)      f32 0/1 band matrix (shared by all sub-tiles)
    first_ref: (1, C)           row 0 of this batch element (left edge value)
    last_ref : (1, C)           row L-1 of this batch element (right edge value)
    cur_ref  : (tls, C)         input rows [i*tls, (i+1)*tls)
    lh_ref   : (h, C)           input rows [i*tls - h, i*tls)       (clamped at 0)
    rh_ref   : (h, C)           input rows [(i+1)*tls, (i+1)*tls+h) (clamped)
    o_ref    : (tl, C)          averaged output rows [i*tl, (i+1)*tl)
    win_ref  : (hp+tls+h, C)    f32 scratch; win[r] = x[clip(i*tls - hp + r, 0, L-1)]
    """
    i = pl.program_id(1)
    base = i * tls
    f32 = jnp.float32
    first = first_ref[...].astype(f32)   # (1, C)
    last = last_ref[...].astype(f32)     # (1, C)

    # --- Stitch the edge-replicated window into VMEM (single f32 cast). ---
    # Main region: original rows [i*tls, (i+1)*tls); rows >= L are replicated.
    rows_b = jax.lax.broadcasted_iota(jnp.int32, (tls, 1), 0) + base
    win_ref[pl.ds(hp, tls), :] = jnp.where(
        rows_b >= l_total, last, cur_ref[...].astype(f32))

    if hp > 0:
        # Left (front-pad) region: original rows [i*tls - hp, i*tls); < 0 -> row 0.
        rows_a = jax.lax.broadcasted_iota(jnp.int32, (hp, 1), 0) + (base - hp)
        win_ref[pl.ds(0, hp), :] = jnp.where(
            rows_a < 0, first, lh_ref[pl.ds(h - hp, hp), :].astype(f32))

    # Right halo region: original rows [(i+1)*tls, (i+1)*tls + h); >= L replicated.
    rows_c = jax.lax.broadcasted_iota(jnp.int32, (h, 1), 0) + (base + tls)
    win_ref[pl.ds(hp + tls, h), :] = jnp.where(
        rows_c >= l_total, last, rh_ref[...].astype(f32))

    # --- Banded-matrix window sum on the MXU, sub-tiled along the band. ---
    a_mat = a_ref[...]
    inv_k = 1.0 / k
    for a0 in range(0, tl, sub):
        seg = win_ref[pl.ds(a0 * s, subw), :]
        acc = jnp.dot(a_mat, seg, preferred_element_type=jnp.float32,
                      precision=jax.lax.Precision.HIGHEST)
        o_ref[pl.ds(a0, sub), :] = (acc * inv_k).astype(o_ref.dtype)


def moving_avg(x, kernel_size, stride=1, *, target_rows=1024):
    """Equivalent of PyTorch moving_avg.forward for x of shape (B, L, C)."""
    B, L, C = x.shape
    k = int(kernel_size)
    s = int(stride)
    assert k >= 1 and s >= 1
    pad = (k - 1) // 2
    L_out = (L + 2 * pad - k) // s + 1
    assert L_out >= 1, "sequence too short for this kernel_size/stride"
    dtype = x.dtype
    isz = jnp.dtype(dtype).itemsize

    # Halo geometry (multiples of 8 sublanes).
    hp = _round_up(pad, 8) if pad > 0 else 0        # left (front-pad) rows
    h = _round_up(max(pad, k - pad - s, 1), 8)      # left/right halo block rows

    # Output time-tile: multiple of 8, and tls = tl*s must be a multiple of h
    # (so the halo index maps land on block boundaries) and >= h.
    tl_unit = _lcm(8, h // math.gcd(h, s))
    # ~12 MiB accounted budget: double-buffered in/out blocks + win scratch +
    # stitch temporary; the scoped VMEM limit is raised below.
    per_row = C * (2 * s * isz + 2 * isz + 8 * s) + 128
    budget_rows = max(tl_unit, (12 * 1024 * 1024) // per_row)
    tl = max(tl_unit, (min(target_rows, budget_rows) // tl_unit) * tl_unit)
    tl = min(tl, _round_up(L_out, tl_unit))
    if B == 1 and L_out > tl_unit:
        # Keep >= 2 grid steps so both v7x TensorCores get work.
        tl = min(tl, _round_up(-(-L_out // 2), tl_unit))
    tl = max(tl, tl_unit)
    tls = tl * s
    n_tiles = -(-L_out // tl)

    rl = tls // h                    # h-blocks per time tile
    nh = -(-L // h)                  # h-blocks covering the input length
    w = hp + tls + h                 # stitched window rows per tile

    # MXU sub-tile of the band: largest power-of-two block dividing tl.
    # Keeping it <= 256 bounds the off-band (wasted) MXU flops so the f32
    # matmul stays hidden under the HBM stream on every generation.
    sub = next(u for u in (256, 128, 64, 32, 16, 8) if tl % u == 0)
    subw = sub * s + hp + h

    # Constant band matrix, identical for every sub-tile / tile / batch:
    # A[u, v] = 1 iff win column v lies in output row u's averaging window.
    u = jnp.arange(sub, dtype=jnp.int32)[:, None]
    v = jnp.arange(subw, dtype=jnp.int32)[None, :]
    lo = hp - pad + u * s
    band = ((v >= lo) & (v < lo + k)).astype(jnp.float32)

    first = x[:, :1, :]          # (B, 1, C) tiny edge-value inputs
    last = x[:, L - 1:L, :]

    kernel = functools.partial(
        _moving_avg_kernel, l_total=L, k=k, s=s, tl=tl, tls=tls, hp=hp, h=h,
        sub=sub, subw=subw)

    cost = pl.CostEstimate(
        flops=int(B * n_tiles * tl * subw * C * 2),
        transcendentals=0,
        bytes_accessed=int(B * C * (L + L_out) * isz),
    )

    return pl.pallas_call(
        kernel,
        out_shape=jax.ShapeDtypeStruct((B, L_out, C), dtype),
        grid_spec=pltpu.PrefetchScalarGridSpec(
            num_scalar_prefetch=0,
            grid=(B, n_tiles),
            in_specs=[
                pl.BlockSpec((sub, subw), lambda b, i: (0, 0)),          # band (resident)
                pl.BlockSpec((None, 1, C), lambda b, i: (b, 0, 0)),      # first row
                pl.BlockSpec((None, 1, C), lambda b, i: (b, 0, 0)),      # last row
                pl.BlockSpec((None, tls, C), lambda b, i: (b, i, 0)),    # current tile
                pl.BlockSpec((None, h, C),                               # left halo
                             lambda b, i: (b, jnp.maximum(i * rl - 1, 0), 0)),
                pl.BlockSpec((None, h, C),                               # right halo
                             lambda b, i: (b, jnp.minimum((i + 1) * rl, nh - 1), 0)),
            ],
            out_specs=pl.BlockSpec((None, tl, C), lambda b, i: (b, i, 0)),
            scratch_shapes=[pltpu.VMEM((w, C), jnp.float32)],
        ),
        compiler_params=pltpu.CompilerParams(
            dimension_semantics=("parallel", "parallel"),
            vmem_limit_bytes=32 * 1024 * 1024),
        cost_estimate=cost,
    )(band, first, last, x, x, x)


def _reference_moving_avg(x, kernel_size, stride):
    """Pure-JAX reference mirroring the PyTorch semantics."""
    pad = (kernel_size - 1) // 2
    front = jnp.repeat(x[:, 0:1, :], pad, axis=1)
    end = jnp.repeat(x[:, -1:, :], pad, axis=1)
    xp = jnp.concatenate([front, x, end], axis=1)
    L_pad = xp.shape[1]
    L_out = (L_pad - kernel_size) // stride + 1
    outs = [jnp.mean(xp[:, t * stride: t * stride + kernel_size, :], axis=1)
            for t in range(L_out)]
    return jnp.stack(outs, axis=1)


if __name__ == "__main__":
    key = jax.random.PRNGKey(0)
    k1, k2, k3 = jax.random.split(key, 3)

    # Autoformer-style kernel_size=25, stride=1; small target_rows forces
    # several time tiles so halo stitching + both edges are exercised.
    B, L, C = 2, 200, 128
    x = jax.random.normal(k1, (B, L, C), dtype=jnp.float32)
    out = jax.block_until_ready(moving_avg(x, 25, 1, target_rows=48))
    ref = _reference_moving_avg(x, 25, 1)
    assert out.shape == ref.shape, (out.shape, ref.shape)
    assert jnp.allclose(out, ref, atol=1e-5, rtol=1e-5), "mismatch (k=25, s=1)"

    # Even kernel_size, narrow channel dim (block = full dim), single tile.
    xs = jax.random.normal(k2, (2, 33, 64), dtype=jnp.float32)
    out_s = jax.block_until_ready(moving_avg(xs, 4, 1))
    ref_s = _reference_moving_avg(xs, 4, 1)
    assert out_s.shape == ref_s.shape, (out_s.shape, ref_s.shape)
    assert jnp.allclose(out_s, ref_s, atol=1e-5, rtol=1e-5), "mismatch (k=4, s=1)"

    # Strided pooling with batch 1 (exercises the >=2-tile v7x split).
    xt = jax.random.normal(k3, (1, 40, 128), dtype=jnp.float32)
    out_t = jax.block_until_ready(moving_avg(xt, 7, 2))
    ref_t = _reference_moving_avg(xt, 7, 2)
    assert out_t.shape == ref_t.shape, (out_t.shape, ref_t.shape)
    assert jnp.allclose(out_t, ref_t, atol=1e-5, rtol=1e-5), "mismatch (k=7, s=2)"

    print("KERNEL_OK")
</pallas_src>

<mosaic_0001>
module attributes {stable_mosaic.version = 11 : i64} {
  func.func @_moving_avg_kernel(%arg0: i32, %arg1: i32, %arg2: memref<16x48xf32, #tpu.memory_space<vmem>>, %arg3: memref<1x1x128xf32, #tpu.memory_space<vmem>>, %arg4: memref<1x1x128xf32, #tpu.memory_space<vmem>>, %arg5: memref<1x48x128xf32, #tpu.memory_space<vmem>>, %arg6: memref<1x16x128xf32, #tpu.memory_space<vmem>>, %arg7: memref<1x16x128xf32, #tpu.memory_space<vmem>>, %arg8: memref<1x48x128xf32, #tpu.memory_space<vmem>>, %arg9: memref<80x128xf32, #tpu.memory_space<vmem>>) attributes {dimension_semantics = [#tpu.dimension_semantics<parallel>, #tpu.dimension_semantics<parallel>], iteration_bounds = array<i64: 2, 5>, scalar_prefetch = 0 : i64, scratch_operands = 1 : i64, tpu.core_type = #tpu.core_type<tc>, window_params = [{pipeline_mode = #tpu.pipeline_mode<synchronous>, transform_indices = @transform_0, window_bounds = array<i64: 16, 48>}, {transform_indices = @transform_1, window_bounds = array<i64: 1, 1, 128>}, {transform_indices = @transform_2, window_bounds = array<i64: 1, 1, 128>}, {transform_indices = @transform_3, window_bounds = array<i64: 1, 48, 128>}, {transform_indices = @transform_4, window_bounds = array<i64: 1, 16, 128>}, {transform_indices = @transform_5, window_bounds = array<i64: 1, 16, 128>}, {transform_indices = @transform_6, window_bounds = array<i64: 1, 48, 128>}]} {
    %c48_i32 = arith.constant 48 : i32
    %0 = arith.muli %arg1, %c48_i32 : i32
    %c0 = arith.constant 0 : index
    %c0_0 = arith.constant 0 : index
    %c0_1 = arith.constant 0 : index
    %1 = vector.load %arg3[%c0, %c0_0, %c0_1] : memref<1x1x128xf32, #tpu.memory_space<vmem>>, vector<1x1x128xf32>
    %2 = vector.shape_cast %1 : vector<1x1x128xf32> to vector<1x128xf32>
    %c0_2 = arith.constant 0 : index
    %c0_3 = arith.constant 0 : index
    %c0_4 = arith.constant 0 : index
    %3 = vector.load %arg4[%c0_2, %c0_3, %c0_4] : memref<1x1x128xf32, #tpu.memory_space<vmem>>, vector<1x1x128xf32>
    %4 = vector.shape_cast %3 : vector<1x1x128xf32> to vector<1x128xf32>
    %5 = tpu.iota {dimensions = array<i32: 0>} : vector<48x1xi32>
    %6 = vector.broadcast %0 : i32 to vector<48x1xi32>
    %7 = arith.addi %5, %6 : vector<48x1xi32>
    %c200_i32 = arith.constant 200 : i32
    %8 = vector.broadcast %c200_i32 : i32 to vector<48x1xi32>
    %9 = arith.cmpi sge, %7, %8 : vector<48x1xi32>
    %c0_5 = arith.constant 0 : index
    %c0_6 = arith.constant 0 : index
    %c0_7 = arith.constant 0 : index
    %10 = vector.load %arg5[%c0_5, %c0_6, %c0_7] : memref<1x48x128xf32, #tpu.memory_space<vmem>>, vector<1x48x128xf32>
    %11 = vector.shape_cast %10 : vector<1x48x128xf32> to vector<48x128xf32>
    %12 = vector.shape_cast %9 : vector<48x1xi1> to vector<48x1xi1>
    %13 = vector.broadcast %12 : vector<48x1xi1> to vector<48x128xi1>
    %14 = vector.shape_cast %4 : vector<1x128xf32> to vector<1x128xf32>
    %15 = vector.broadcast %14 : vector<1x128xf32> to vector<48x128xf32>
    %16 = arith.select %13, %15, %11 : vector<48x128xi1>, vector<48x128xf32>
    %c16 = arith.constant 16 : index
    %c0_8 = arith.constant 0 : index
    %17 = vector.load %arg9[%c16, %c0_8] : memref<80x128xf32, #tpu.memory_space<vmem>>, vector<48x128xf32>
    tpu.vector_store %arg9[%c16, %c0_8], %16 {strides = array<i32>} : memref<80x128xf32, #tpu.memory_space<vmem>>, vector<48x128xf32>,
    %18 = tpu.iota {dimensions = array<i32: 0>} : vector<16x1xi32>
    %c16_i32 = arith.constant 16 : i32
    %19 = arith.subi %0, %c16_i32 : i32
    %20 = vector.broadcast %19 : i32 to vector<16x1xi32>
    %21 = arith.addi %18, %20 : vector<16x1xi32>
    %c0_i32 = arith.constant 0 : i32
    %22 = vector.broadcast %c0_i32 : i32 to vector<16x1xi32>
    %23 = arith.cmpi slt, %21, %22 : vector<16x1xi32>
    %c0_9 = arith.constant 0 : index
    %c0_10 = arith.constant 0 : index
    %c0_11 = arith.constant 0 : index
    %24 = vector.load %arg6[%c0_9, %c0_10, %c0_11] : memref<1x16x128xf32, #tpu.memory_space<vmem>>, vector<1x16x128xf32>
    %25 = vector.shape_cast %24 : vector<1x16x128xf32> to vector<16x128xf32>
    %26 = vector.shape_cast %23 : vector<16x1xi1> to vector<16x1xi1>
    %27 = vector.broadcast %26 : vector<16x1xi1> to vector<16x128xi1>
    %28 = vector.shape_cast %2 : vector<1x128xf32> to vector<1x128xf32>
    %29 = vector.broadcast %28 : vector<1x128xf32> to vector<16x128xf32>
    %30 = arith.select %27, %29, %25 : vector<16x128xi1>, vector<16x128xf32>
    %c0_12 = arith.constant 0 : index
    %c0_13 = arith.constant 0 : index
    %31 = vector.load %arg9[%c0_12, %c0_13] : memref<80x128xf32, #tpu.memory_space<vmem>>, vector<16x128xf32>
    tpu.vector_store %arg9[%c0_12, %c0_13], %30 {strides = array<i32>} : memref<80x128xf32, #tpu.memory_space<vmem>>, vector<16x128xf32>,
    %32 = tpu.iota {dimensions = array<i32: 0>} : vector<16x1xi32>
    %c48_i32_14 = arith.constant 48 : i32
    %33 = arith.addi %0, %c48_i32_14 : i32
    %34 = vector.broadcast %33 : i32 to vector<16x1xi32>
    %35 = arith.addi %32, %34 : vector<16x1xi32>
    %c200_i32_15 = arith.constant 200 : i32
    %36 = vector.broadcast %c200_i32_15 : i32 to vector<16x1xi32>
    %37 = arith.cmpi sge, %35, %36 : vector<16x1xi32>
    %c0_16 = arith.constant 0 : index
    %c0_17 = arith.constant 0 : index
    %c0_18 = arith.constant 0 : index
    %38 = vector.load %arg7[%c0_16, %c0_17, %c0_18] : memref<1x16x128xf32, #tpu.memory_space<vmem>>, vector<1x16x128xf32>
    %39 = vector.shape_cast %38 : vector<1x16x128xf32> to vector<16x128xf32>
    %40 = vector.shape_cast %37 : vector<16x1xi1> to vector<16x1xi1>
    %41 = vector.broadcast %40 : vector<16x1xi1> to vector<16x128xi1>
    %42 = vector.shape_cast %4 : vector<1x128xf32> to vector<1x128xf32>
    %43 = vector.broadcast %42 : vector<1x128xf32> to vector<16x128xf32>
    %44 = arith.select %41, %43, %39 : vector<16x128xi1>, vector<16x128xf32>
    %c64 = arith.constant 64 : index
    %c0_19 = arith.constant 0 : index
    %45 = vector.load %arg9[%c64, %c0_19] : memref<80x128xf32, #tpu.memory_space<vmem>>, vector<16x128xf32>
    tpu.vector_store %arg9[%c64, %c0_19], %44 {strides = array<i32>} : memref<80x128xf32, #tpu.memory_space<vmem>>, vector<16x128xf32>,
    %c0_20 = arith.constant 0 : index
    %c0_21 = arith.constant 0 : index
    %46 = vector.load %arg2[%c0_20, %c0_21] : memref<16x48xf32, #tpu.memory_space<vmem>>, vector<16x48xf32>
    %c0_22 = arith.constant 0 : index
    %c0_23 = arith.constant 0 : index
    %47 = vector.load %arg9[%c0_22, %c0_23] : memref<80x128xf32, #tpu.memory_space<vmem>>, vector<48x128xf32>
    %cst = arith.constant dense<0.000000e+00> : vector<16x128xf32>
    %48 = tpu.matmul %46, %47, %cst {dimension_numbers = #tpu.dot_dimension_numbers<[1], [0], [0], [1], [0, 0, 1, 1], [], []>, precision = #tpu.contract_precision<fp32>} : vector<16x48xf32>, vector<48x128xf32>, vector<16x128xf32> -> vector<16x128xf32>
    %cst_24 = arith.constant 4.000000e-02 : f32
    %49 = vector.broadcast %cst_24 : f32 to vector<16x128xf32>
    %50 = arith.mulf %48, %49 : vector<16x128xf32>
    %c0_25 = arith.constant 0 : index
    %c0_26 = arith.constant 0 : index
    %c0_27 = arith.constant 0 : index
    %51 = vector.load %arg8[%c0_25, %c0_26, %c0_27] : memref<1x48x128xf32, #tpu.memory_space<vmem>>, vector<1x16x128xf32>
    %52 = vector.shape_cast %51 : vector<1x16x128xf32> to vector<16x128xf32>
    %53 = vector.shape_cast %50 : vector<16x128xf32> to vector<1x16x128xf32>
    tpu.vector_store %arg8[%c0_25, %c0_26, %c0_27], %53 {strides = array<i32>} : memref<1x48x128xf32, #tpu.memory_space<vmem>>, vector<1x16x128xf32>,
    %c16_28 = arith.constant 16 : index
    %c0_29 = arith.constant 0 : index
    %54 = vector.load %arg9[%c16_28, %c0_29] : memref<80x128xf32, #tpu.memory_space<vmem>>, vector<48x128xf32>
    %cst_30 = arith.constant dense<0.000000e+00> : vector<16x128xf32>
    %55 = tpu.matmul %46, %54, %cst_30 {dimension_numbers = #tpu.dot_dimension_numbers<[1], [0], [0], [1], [0, 0, 1, 1], [], []>, precision = #tpu.contract_precision<fp32>} : vector<16x48xf32>, vector<48x128xf32>, vector<16x128xf32> -> vector<16x128xf32>
    %cst_31 = arith.constant 4.000000e-02 : f32
    %56 = vector.broadcast %cst_31 : f32 to vector<16x128xf32>
    %57 = arith.mulf %55, %56 : vector<16x128xf32>
    %c0_32 = arith.constant 0 : index
    %c16_33 = arith.constant 16 : index
    %c0_34 = arith.constant 0 : index
    %58 = vector.load %arg8[%c0_32, %c16_33, %c0_34] : memref<1x48x128xf32, #tpu.memory_space<vmem>>, vector<1x16x128xf32>
    %59 = vector.shape_cast %58 : vector<1x16x128xf32> to vector<16x128xf32>
    %60 = vector.shape_cast %57 : vector<16x128xf32> to vector<1x16x128xf32>
    tpu.vector_store %arg8[%c0_32, %c16_33, %c0_34], %60 {strides = array<i32>} : memref<1x48x128xf32, #tpu.memory_space<vmem>>, vector<1x16x128xf32>,
    %c32 = arith.constant 32 : index
    %c0_35 = arith.constant 0 : index
    %61 = vector.load %arg9[%c32, %c0_35] : memref<80x128xf32, #tpu.memory_space<vmem>>, vector<48x128xf32>
    %cst_36 = arith.constant dense<0.000000e+00> : vector<16x128xf32>
    %62 = tpu.matmul %46, %61, %cst_36 {dimension_numbers = #tpu.dot_dimension_numbers<[1], [0], [0], [1], [0, 0, 1, 1], [], []>, precision = #tpu.contract_precision<fp32>} : vector<16x48xf32>, vector<48x128xf32>, vector<16x128xf32> -> vector<16x128xf32>
    %cst_37 = arith.constant 4.000000e-02 : f32
    %63 = vector.broadcast %cst_37 : f32 to vector<16x128xf32>
    %64 = arith.mulf %62, %63 : vector<16x128xf32>
    %c0_38 = arith.constant 0 : index
    %c32_39 = arith.constant 32 : index
    %c0_40 = arith.constant 0 : index
    %65 = vector.load %arg8[%c0_38, %c32_39, %c0_40] : memref<1x48x128xf32, #tpu.memory_space<vmem>>, vector<1x16x128xf32>
    %66 = vector.shape_cast %65 : vector<1x16x128xf32> to vector<16x128xf32>
    %67 = vector.shape_cast %64 : vector<16x128xf32> to vector<1x16x128xf32>
    tpu.vector_store %arg8[%c0_38, %c32_39, %c0_40], %67 {strides = array<i32>} : memref<1x48x128xf32, #tpu.memory_space<vmem>>, vector<1x16x128xf32>,
    return
  }
  func.func @transform_0(%arg0: i32, %arg1: i32) -> (i32, i32) {
    %c0_i32 = arith.constant 0 : i32
    %c0_i32_0 = arith.constant 0 : i32
    %c0_i32_1 = arith.constant 0 : i32
    return %c0_i32, %c0_i32_0 : i32, i32
  }
  func.func @transform_1(%arg0: i32, %arg1: i32) -> (i32, i32, i32) {
    %c0_i32 = arith.constant 0 : i32
    %c0_i32_0 = arith.constant 0 : i32
    %c0_i32_1 = arith.constant 0 : i32
    return %arg0, %c0_i32, %c0_i32_0 : i32, i32, i32
  }
  func.func @transform_2(%arg0: i32, %arg1: i32) -> (i32, i32, i32) {
    %c0_i32 = arith.constant 0 : i32
    %c0_i32_0 = arith.constant 0 : i32
    %c0_i32_1 = arith.constant 0 : i32
    return %arg0, %c0_i32, %c0_i32_0 : i32, i32, i32
  }
  func.func @transform_3(%arg0: i32, %arg1: i32) -> (i32, i32, i32) {
    %c0_i32 = arith.constant 0 : i32
    %c0_i32_0 = arith.constant 0 : i32
    return %arg0, %arg1, %c0_i32 : i32, i32, i32
  }
  func.func @transform_4(%arg0: i32, %arg1: i32) -> (i32, i32, i32) {
    %c3_i32 = arith.constant 3 : i32
    %0 = arith.muli %arg1, %c3_i32 : i32
    %c1_i32 = arith.constant 1 : i32
    %1 = arith.subi %0, %c1_i32 : i32
    %c0_i32 = arith.constant 0 : i32
    %2 = arith.maxsi %1, %c0_i32 : i32
    %c0_i32_0 = arith.constant 0 : i32
    %c0_i32_1 = arith.constant 0 : i32
    return %arg0, %2, %c0_i32_0 : i32, i32, i32
  }
  func.func @transform_5(%arg0: i32, %arg1: i32) -> (i32, i32, i32) {
    %c1_i32 = arith.constant 1 : i32
    %0 = arith.addi %arg1, %c1_i32 : i32
    %c3_i32 = arith.constant 3 : i32
    %1 = arith.muli %0, %c3_i32 : i32
    %c12_i32 = arith.constant 12 : i32
    %2 = arith.minsi %1, %c12_i32 : i32
    %c0_i32 = arith.constant 0 : i32
    %c0_i32_0 = arith.constant 0 : i32
    return %arg0, %2, %c0_i32 : i32, i32, i32
  }
  func.func @transform_6(%arg0: i32, %arg1: i32) -> (i32, i32, i32) {
    %c0_i32 = arith.constant 0 : i32
    %c0_i32_0 = arith.constant 0 : i32
    return %arg0, %arg1, %c0_i32 : i32, i32, i32
  }
}

</mosaic_0001>

<llo_original>
// kernel: tpu_custom_call.1
$region0: #{tpu_custom_call.1}
  #allocation0 [shape = 'u32[]', space=smem, size = 0x4, offset = 0x4, fixed_abs, tag = 'smem constant byte address 0x4 - core index']
  #allocation1 [shape = 'u32[144,128]{1,0:T(1,128)}', space=vmem, size = 0x12000, scoped, tag = 'internal scratch']
  #allocation2 [shape = 'f32[80,128]{1,0:T(8,128)}', space=vmem, size = 0xa000, scoped, tag = 'scratch operand']
  %s0 = inlined_call_operand.hbm [shape: f32[16,48], index: 0, kind: input, shape index: {}]
  %s1 = inlined_call_operand.hbm [shape: f32[2,1,128], index: 1, kind: input, shape index: {}]
  %s2 = inlined_call_operand.vmem [shape: f32[2,1,128], index: 2, kind: input, shape index: {}]
  %s3 = inlined_call_operand.hbm [shape: f32[2,200,128], index: 3, kind: input, shape index: {}]
  %s4 = inlined_call_operand.hbm [shape: f32[2,200,128], index: 4, kind: input, shape index: {}]
  %s5 = inlined_call_operand.hbm [shape: f32[2,200,128], index: 5, kind: input, shape index: {}]
  %s6 = inlined_call_operand.hbm [shape: f32[2,200,128], index: 6, kind: output, shape index: {}]
  %s7 = sld [smem:[#allocation0]]
  $region77: #{tpu_custom_call.1} parent=0
    _
  %s9 = ssub.s32 1, %s7
  %s10 = scalar_select 0, %s9, %s7
  $region1: #{tpu_custom_call.1} parent=0
    #allocation3 [shape = 'u8[8192]{0}', space=vmem, size = 0x2000, scoped, tag = 'input window, operand 0, single buffered']
    #allocation4 [shape = 's32[2]{0}', space=sflag, size = 0x8, scoped, tag = 'scoped memory for tpu_custom_call.1']
    #allocation5 [shape = 's32[2]{0}', space=sflag, size = 0x8, scoped, tag = 'scoped memory for tpu_custom_call.1']
    #allocation6 [shape = 'u8[1024]{0}', space=vmem, size = 0x400, scoped, tag = 'input window, operand 1']
    #allocation7 [shape = 's32[2]{0}', space=sflag, size = 0x8, scoped, tag = 'scoped memory for tpu_custom_call.1']
    #allocation8 [shape = 'u8[49152]{0}', space=vmem, size = 0xc000, scoped, tag = 'input window, operand 3']
    #allocation9 [shape = 'u8[16384]{0}', space=vmem, size = 0x4000, scoped, tag = 'input window, operand 4']
    #allocation10 [shape = 's32[2]{0}', space=sflag, size = 0x8, scoped, tag = 'scoped memory for tpu_custom_call.1']
    #allocation11 [shape = 'u8[16384]{0}', space=vmem, size = 0x4000, scoped, tag = 'input window, operand 5']
    #allocation12 [shape = 'u8[49152]{0}', space=vmem, size = 0xc000, scoped, tag = 'output window, operand 0']
    %11 = vsyncpa [#allocation4], 0
    %12 = vsyncpa [#allocation7], 0
    %s13 = scalar_lea.sflag [#allocation7], 1
    %14 = vsyncpa %s13, 0
    %15 = vsyncpa [#allocation10], 0
    %s16 = scalar_lea.sflag [#allocation10], 1
    %17 = vsyncpa %s16, 0
    %18 = vsyncpa [#allocation5], 0
    %s19 = scalar_lea.sflag [#allocation5], 1
    %20 = vsyncpa %s19, 0
    loop: start=0, step=1, limit=12
    $region2: #{tpu_custom_call.1} parent=1 // loop_pre_header
      _
    $region3: #{tpu_custom_call.1} parent=1 // loop_header
      %s22 = sphi 0, %s26
      %p23 = scmp.ge.s32.totalorder %s22, 12
      %s29 = sphi 0, %s41
      %s30 = sphi 0, %s37
      %s31 = sphi 0, %s29
      %s32 = sphi 0, %s30
      %s33 = sphi 0, %s31
      %s34 = sphi 0, %s32
      %s42 = sphi 0, %s42
      %s44 = sphi 0, %s42
      %s45 = sphi 0, %s44
      %s59 = sphi 0, %s45
      %s65 = sphi 0, %s67
      %s68 = sphi 0, %s65
      %s69 = sphi 0, %s68
      %s85 = sphi 0, %s69
      %s91 = sphi 0, %s93
      %s94 = sphi 0, %s91
      %s95 = sphi 0, %s94
      %s111 = sphi 0, %s95
      %s119 = sphi 0, %s121
      %s122 = sphi 0, %s119
      %s123 = sphi 0, %s122
      %s139 = sphi 0, %s123
      %s155 = sphi 0, %s157
      %s158 = sphi 0, %s155
      %s159 = sphi 0, %s158
      %s175 = sphi 0, %s159
      %s191 = sphi 0, %s193
      %s194 = sphi 0, %s191
      %s195 = sphi 0, %s194
      %s211 = sphi 0, %s195
      %s219 = sphi 0, %s221
      %s222 = sphi 0, %s219
      %s223 = sphi 0, %s222
      %s239 = sphi 0, %s223
    $region4: #{tpu_custom_call.1} parent=1 // loop_header_branch
      %25 = sbr.rel (%p23) target = $region8
    $region5: #{tpu_custom_call.1} parent=1 // loop_body
      %s27 = ssub.s32 %s22, 1
      %s28 = ssub.s32 %s22, 2
      %s35 = sadd.s32 1, %s30
      %p36 = scmp.ge.s32.totalorder %s35, 5
      %s37 = scalar_select %p36, 0, %s35
      %s38 = sadd.s32 1, %s29
      %s39 = scalar_select %p36, %s38, %s29
      %p40 = scmp.ge.s32.totalorder %s39, 2
      %s41 = scalar_select %p40, 0, %s39
      %s43 = sadd.s32 %s42, 1
      %p46 = scmp.eq.s32.totalorder %s22, 9
      %p47 = scmp.ne.s32.totalorder %s42, %s44
      %p48 = scmp.eq.s32.totalorder %s22, 0
      %p49 = por %p47, %p48
      %p50 = scmp.ne.s32.totalorder %s42, %s44
      %p51 = scmp.eq.s32.totalorder %s27, 9
      %p52 = por %p50, %p51
      %p53 = scmp.ne.s32.totalorder %s44, %s45
      %p54 = scmp.eq.s32.totalorder %s27, 0
      %p55 = por %p53, %p54
      %p56 = scmp.ne.s32.totalorder %s44, %s45
      %p57 = scmp.eq.s32.totalorder %s28, 9
      %p58 = por %p56, %p57
      %p60 = scmp.ne.s32.totalorder %s45, %s59
      %p61 = scmp.eq.s32.totalorder %s28, 0
      %p62 = por %p60, %p61
      %s63 = ssub.s32 %s29, %s41
      %p64 = scmp.eq.s32.totalorder %s63, 0
      %s66 = sadd.s32 %s65, 1
      %s67 = scalar_select %p64, %s65, %s66
      %p70 = pneg %p64
      %p71 = scmp.eq.s32.totalorder %s22, 9
      %p72 = por %p70, %p71
      %p73 = scmp.ne.s32.totalorder %s65, %s68
      %p74 = scmp.eq.s32.totalorder %s22, 0
      %p75 = por %p73, %p74
      %p76 = scmp.ne.s32.totalorder %s65, %s68
      %p77 = scmp.eq.s32.totalorder %s27, 9
      %p78 = por %p76, %p77
      %p79 = scmp.ne.s32.totalorder %s68, %s69
      %p80 = scmp.eq.s32.totalorder %s27, 0
      %p81 = por %p79, %p80
      %p82 = scmp.ne.s32.totalorder %s68, %s69
      %p83 = scmp.eq.s32.totalorder %s28, 9
      %p84 = por %p82, %p83
      %p86 = scmp.ne.s32.totalorder %s69, %s85
      %p87 = scmp.eq.s32.totalorder %s28, 0
      %p88 = por %p86, %p87
      %s89 = ssub.s32 %s29, %s41
      %p90 = scmp.eq.s32.totalorder %s89, 0
      %s92 = sadd.s32 %s91, 1
      %s93 = scalar_select %p90, %s91, %s92
      %p96 = pneg %p90
      %p97 = scmp.eq.s32.totalorder %s22, 9
      %p98 = por %p96, %p97
      %p99 = scmp.ne.s32.totalorder %s91, %s94
      %p100 = scmp.eq.s32.totalorder %s22, 0
      %p101 = por %p99, %p100
      %p102 = scmp.ne.s32.totalorder %s91, %s94
      %p103 = scmp.eq.s32.totalorder %s27, 9
      %p104 = por %p102, %p103
      %p105 = scmp.ne.s32.totalorder %s94, %s95
      %p106 = scmp.eq.s32.totalorder %s27, 0
      %p107 = por %p105, %p106
      %p108 = scmp.ne.s32.totalorder %s94, %s95
      %p109 = scmp.eq.s32.totalorder %s28, 9
      %p110 = por %p108, %p109
      %p112 = scmp.ne.s32.totalorder %s95, %s111
      %p113 = scmp.eq.s32.totalorder %s28, 0
      %p114 = por %p112, %p113
      %s115 = ssub.s32 %s29, %s41
      %s116 = ssub.s32 %s30, %s37
      %s117 = sor.u32 %s115, %s116
      %p118 = scmp.eq.s32.totalorder %s117, 0
      %s120 = sadd.s32 %s119, 1
      %s121 = scalar_select %p118, %s119, %s120
      %p124 = pneg %p118
      %p125 = scmp.eq.s32.totalorder %s22, 9
      %p126 = por %p124, %p125
      %p127 = scmp.ne.s32.totalorder %s119, %s122
      %p128 = scmp.eq.s32.totalorder %s22, 0
      %p129 = por %p127, %p128
      %p130 = scmp.ne.s32.totalorder %s119, %s122
      %p131 = scmp.eq.s32.totalorder %s27, 9
      %p132 = por %p130, %p131
      %p133 = scmp.ne.s32.totalorder %s122, %s123
      %p134 = scmp.eq.s32.totalorder %s27, 0
      %p135 = por %p133, %p134
      %p136 = scmp.ne.s32.totalorder %s122, %s123
      %p137 = scmp.eq.s32.totalorder %s28, 9
      %p138 = por %p136, %p137
      %p140 = scmp.ne.s32.totalorder %s123, %s139
      %p141 = scmp.eq.s32.totalorder %s28, 0
      %p142 = por %p140, %p141
      %s143 = smul.u32 %s30, 3
      %s144 = ssub.s32 %s143, 1
      %p145 = scmp.gt.s32.totalorder %s144, 0
      %s146 = scalar_select %p145, %s144, 0
      %s147 = smul.u32 %s37, 3
      %s148 = ssub.s32 %s147, 1
      %p149 = scmp.gt.s32.totalorder %s148, 0
      %s150 = scalar_select %p149, %s148, 0
      %s151 = ssub.s32 %s29, %s41
      %s152 = ssub.s32 %s146, %s150
      %s153 = sor.u32 %s151, %s152
      %p154 = scmp.eq.s32.totalorder %s153, 0
      %s156 = sadd.s32 %s155, 1
      %s157 = scalar_select %p154, %s155, %s156
      %p160 = pneg %p154
      %p161 = scmp.eq.s32.totalorder %s22, 9
      %p162 = por %p160, %p161
      %p163 = scmp.ne.s32.totalorder %s155, %s158
      %p164 = scmp.eq.s32.totalorder %s22, 0
      %p165 = por %p163, %p164
      %p166 = scmp.ne.s32.totalorder %s155, %s158
      %p167 = scmp.eq.s32.totalorder %s27, 9
      %p168 = por %p166, %p167
      %p169 = scmp.ne.s32.totalorder %s158, %s159
      %p170 = scmp.eq.s32.totalorder %s27, 0
      %p171 = por %p169, %p170
      %p172 = scmp.ne.s32.totalorder %s158, %s159
      %p173 = scmp.eq.s32.totalorder %s28, 9
      %p174 = por %p172, %p173
      %p176 = scmp.ne.s32.totalorder %s159, %s175
      %p177 = scmp.eq.s32.totalorder %s28, 0
      %p178 = por %p176, %p177
      %s179 = sadd.s32 %s30, 1
      %s180 = smul.u32 %s179, 3
      %p181 = scmp.lt.s32.totalorder %s180, 12
      %s182 = scalar_select %p181, %s180, 12
      %s183 = sadd.s32 %s37, 1
      %s184 = smul.u32 %s183, 3
      %p185 = scmp.lt.s32.totalorder %s184, 12
      %s186 = scalar_select %p185, %s184, 12
      %s187 = ssub.s32 %s29, %s41
      %s188 = ssub.s32 %s182, %s186
      %s189 = sor.u32 %s187, %s188
      %p190 = scmp.eq.s32.totalorder %s189, 0
      %s192 = sadd.s32 %s191, 1
      %s193 = scalar_select %p190, %s191, %s192
      %p196 = pneg %p190
      %p197 = scmp.eq.s32.totalorder %s22, 9
      %p198 = por %p196, %p197
      %p199 = scmp.ne.s32.totalorder %s191, %s194
      %p200 = scmp.eq.s32.totalorder %s22, 0
      %p201 = por %p199, %p200
      %p202 = scmp.ne.s32.totalorder %s191, %s194
      %p203 = scmp.eq.s32.totalorder %s27, 9
      %p204 = por %p202, %p203
      %p205 = scmp.ne.s32.totalorder %s194, %s195
      %p206 = scmp.eq.s32.totalorder %s27, 0
      %p207 = por %p205, %p206
      %p208 = scmp.ne.s32.totalorder %s194, %s195
      %p209 = scmp.eq.s32.totalorder %s28, 9
      %p210 = por %p208, %p209
      %p212 = scmp.ne.s32.totalorder %s195, %s211
      %p213 = scmp.eq.s32.totalorder %s28, 0
      %p214 = por %p212, %p213
      %s215 = ssub.s32 %s29, %s41
      %s216 = ssub.s32 %s30, %s37
      %s217 = sor.u32 %s215, %s216
      %p218 = scmp.eq.s32.totalorder %s217, 0
      %s220 = sadd.s32 %s219, 1
      %s221 = scalar_select %p218, %s219, %s220
      %p224 = pneg %p218
      %p225 = scmp.eq.s32.totalorder %s22, 9
      %p226 = por %p224, %p225
      %p227 = scmp.ne.s32.totalorder %s219, %s222
      %p228 = scmp.eq.s32.totalorder %s22, 0
      %p229 = por %p227, %p228
      %p230 = scmp.ne.s32.totalorder %s219, %s222
      %p231 = scmp.eq.s32.totalorder %s27, 9
      %p232 = por %p230, %p231
      %p233 = scmp.ne.s32.totalorder %s222, %s223
      %p234 = scmp.eq.s32.totalorder %s27, 0
      %p235 = por %p233, %p234
      %p236 = scmp.ne.s32.totalorder %s222, %s223
      %p237 = scmp.eq.s32.totalorder %s28, 9
      %p238 = por %p236, %p237
      %p240 = scmp.ne.s32.totalorder %s223, %s239
      %p241 = scmp.eq.s32.totalorder %s28, 0
      %p242 = por %p240, %p241
      %p243 = scmp.le.s32.totalorder 1, %s22
      %p244 = scmp.lt.s32.totalorder %s22, 11
      %p245 = pnand %p243, %p244
      %p246 = pneg %p245
      // Predicated region
      $region9: #{tpu_custom_call.1} parent=5 // pred_check
        _
      $region10: #{tpu_custom_call.1} parent=5 // pred_check_branch
        %248 = sbr.rel (%p245) target = $region12
      $region11: #{tpu_custom_call.1} parent=5 // pred_region
        %s249 = ssub.s32 %s22, 1
        // Predicated region
        $region13: #{tpu_custom_call.1} parent=11 // pred_check
          %p250 = pneg %p55
        $region14: #{tpu_custom_call.1} parent=11 // pred_check_branch
          %252 = sbr.rel (%p250) target = $region16
        $region15: #{tpu_custom_call.1} parent=11 // pred_region
          %s254 = ssub.s32 256, 256
          %255 = vsyncadd [#allocation4], %s254
          %s256 = sshll.u32 [#allocation3], 4
          %s257 = int_to_ptr.vmem [resolvable:$true] %s256
          %262 = dma.hbm_to_vmem [thread:$0]  %s0, 256, %s257, [#allocation4], 128, 128, 8
        $region16: #{tpu_custom_call.1} parent=11 // pred_fallthru
          _
      $region12: #{tpu_custom_call.1} parent=5 // pred_fallthru
        _
      %p263 = scmp.lt.s32.totalorder %s22, 10
      // Predicated region
      $region17: #{tpu_custom_call.1} parent=5 // pred_check
        %p264 = pneg %p263
      $region18: #{tpu_custom_call.1} parent=5 // pred_check_branch
        %266 = sbr.rel (%p264) target = $region20
      $region19: #{tpu_custom_call.1} parent=5 // pred_region
        // Predicated region
        $region21: #{tpu_custom_call.1} parent=19 // pred_check
          %p267 = pneg %p75
        $region22: #{tpu_custom_call.1} parent=19 // pred_check_branch
          %269 = sbr.rel (%p267) target = $region24
        $region23: #{tpu_custom_call.1} parent=19 // pred_region
          %s270 = sand.u32 %s22, 1
          %s271 = scalar_lea.sflag [#allocation7], %s270
          %s272 = sand.u32 %s65, 1
          %s273 = scalar_lea.vmem [#allocation6], %s272
          %s275 = ssub.s32 16, 16
          %276 = vsyncadd %s271, %s275
          %s277 = smul.addr %s29, 16
          %s278 = scalar_lea.hbm %s1, %s277
          %s280 = sshll.u32 %s273, 4
          %s281 = int_to_ptr.vmem [resolvable:$true] %s280
          %283 = dma.hbm_to_vmem [thread:$0]  %s278, 16, %s281, %s271
        $region24: #{tpu_custom_call.1} parent=19 // pred_fallthru
          _
        // Predicated region
        $region25: #{tpu_custom_call.1} parent=19 // pred_check
          %p284 = pneg %p101
        $region26: #{tpu_custom_call.1} parent=19 // pred_check_branch
          %286 = sbr.rel (%p284) target = $region28
        $region27: #{tpu_custom_call.1} parent=19 // pred_region
          %p287 = scmp.lt.s32.totalorder %s29, 1
          %s288 = scalar_select %p287, %s29, 1
          %s289 = scalar_lea.vmem %s2, %s288
        $region28: #{tpu_custom_call.1} parent=19 // pred_fallthru
          _
        // Predicated region
        $region29: #{tpu_custom_call.1} parent=19 // pred_check
          %p290 = pneg %p129
        $region30: #{tpu_custom_call.1} parent=19 // pred_check_branch
          %292 = sbr.rel (%p290) target = $region32
        $region31: #{tpu_custom_call.1} parent=19 // pred_region
          %s293 = sand.u32 %s22, 1
          %s294 = scalar_lea.sflag [#allocation7], %s293
          %s295 = sand.u32 %s119, 1
          %s296 = smul.addr %s295, 48
          %s297 = scalar_lea.vmem [#allocation8], %s296
          %s298 = smul.u32 6, %s30
          %s299 = ssub.s32 25, %s298
          %p300 = scmp.lt.s32.totalorder %s299, 6
          %s301 = scalar_select %p300, %s299, 6
          %s302 = smul.u32 128, %s301
          %s304 = ssub.s32 768, %s302
          %305 = vsyncadd %s294, %s304
          %p306 = scmp.ne.s32.totalorder 0, %s302
          %s307 = smul.addr %s29, 25
          %s308 = sadd.s32 %s298, %s307
          %s309 = smul.addr %s308, 128
          %s310 = scalar_lea.hbm %s3, %s309
          %s311 = smul.u32 8, %s301
          %s312 = sshll.u32 %s297, 4
          %s313 = int_to_ptr.vmem [resolvable:$true] %s312
          %s314 = sshll.u32 %s311, 4
          %318 = dma.hbm_to_vmem [thread:$0]  (%p306), %s310, %s314, %s313, %s294, 128, 128, 8
        $region32: #{tpu_custom_call.1} parent=19 // pred_fallthru
          _
        // Predicated region
        $region33: #{tpu_custom_call.1} parent=19 // pred_check
          %p319 = pneg %p165
        $region34: #{tpu_custom_call.1} parent=19 // pred_check_branch
          %321 = sbr.rel (%p319) target = $region36
        $region35: #{tpu_custom_call.1} parent=19 // pred_region
          %s322 = sand.u32 %s22, 1
          %s323 = scalar_lea.sflag [#allocation10], %s322
          %s324 = sand.u32 %s155, 1
          %s325 = smul.addr %s324, 16
          %s326 = scalar_lea.vmem [#allocation9], %s325
          %s327 = smul.u32 %s30, 3
          %s328 = ssub.s32 %s327, 1
          %p329 = scmp.gt.s32.totalorder %s328, 0
          %s330 = scalar_select %p329, %s328, 0
          %s331 = smul.u32 2, %s330
          %s332 = ssub.s32 25, %s331
          %p333 = scmp.lt.s32.totalorder %s332, 2
          %s334 = scalar_select %p333, %s332, 2
          %s335 = smul.u32 128, %s334
          %s337 = ssub.s32 256, %s335
          %338 = vsyncadd %s323, %s337
          %p339 = scmp.ne.s32.totalorder 0, %s335
          %s340 = smul.addr %s29, 25
          %s341 = sadd.s32 %s331, %s340
          %s342 = smul.addr %s341, 128
          %s343 = scalar_lea.hbm %s4, %s342
          %s344 = smul.u32 8, %s334
          %s345 = sshll.u32 %s326, 4
          %s346 = int_to_ptr.vmem [resolvable:$true] %s345
          %s347 = sshll.u32 %s344, 4
          %351 = dma.hbm_to_vmem [thread:$0]  (%p339), %s343, %s347, %s346, %s323, 128, 128, 8
        $region36: #{tpu_custom_call.1} parent=19 // pred_fallthru
          _
        // Predicated region
        $region37: #{tpu_custom_call.1} parent=19 // pred_check
          %p352 = pneg %p201
        $region38: #{tpu_custom_call.1} parent=19 // pred_check_branch
          %354 = sbr.rel (%p352) target = $region40
        $region39: #{tpu_custom_call.1} parent=19 // pred_region
          %s355 = sand.u32 %s22, 1
          %s356 = scalar_lea.sflag [#allocation10], %s355
          %s357 = sand.u32 %s191, 1
          %s358 = smul.addr %s357, 16
          %s359 = scalar_lea.vmem [#allocation11], %s358
          %s360 = sadd.s32 %s30, 1
          %s361 = smul.u32 %s360, 3
          %p362 = scmp.lt.s32.totalorder %s361, 12
          %s363 = scalar_select %p362, %s361, 12
          %s364 = smul.u32 2, %s363
          %s365 = ssub.s32 25, %s364
          %p366 = scmp.lt.s32.totalorder %s365, 2
          %s367 = scalar_select %p366, %s365, 2
          %s368 = smul.u32 128, %s367
          %s370 = ssub.s32 256, %s368
          %371 = vsyncadd %s356, %s370
          %p372 = scmp.ne.s32.totalorder 0, %s368
          %s373 = smul.addr %s29, 25
          %s374 = sadd.s32 %s364, %s373
          %s375 = smul.addr %s374, 128
          %s376 = scalar_lea.hbm %s5, %s375
          %s377 = smul.u32 8, %s367
          %s378 = sshll.u32 %s359, 4
          %s379 = int_to_ptr.vmem [resolvable:$true] %s378
          %s380 = sshll.u32 %s377, 4
          %384 = dma.hbm_to_vmem [thread:$0]  (%p372), %s376, %s380, %s379, %s356, 128, 128, 8
        $region40: #{tpu_custom_call.1} parent=19 // pred_fallthru
          _
      $region20: #{tpu_custom_call.1} parent=5 // pred_fallthru
        _
      %p385 = scmp.le.s32.totalorder 1, %s22
      %p386 = scmp.lt.s32.totalorder %s22, 11
      %p387 = pnand %p385, %p386
      %p388 = pneg %p387
      // Predicated region
      $region41: #{tpu_custom_call.1} parent=5 // pred_check
        _
      $region42: #{tpu_custom_call.1} parent=5 // pred_check_branch
        %390 = sbr.rel (%p387) target = $region44
      $region43: #{tpu_custom_call.1} parent=5 // pred_region
        %s391 = ssub.s32 %s22, 1
        // Predicated region
        $region45: #{tpu_custom_call.1} parent=43 // pred_check
          %p392 = pneg %p55
        $region46: #{tpu_custom_call.1} parent=43 // pred_check_branch
          %394 = sbr.rel (%p392) target = $region48
        $region47: #{tpu_custom_call.1} parent=43 // pred_region
          %395 = dma.done [#allocation4], 256
        $region48: #{tpu_custom_call.1} parent=43 // pred_fallthru
          _
        %s396 = sand.u32 %s27, 1
        %s397 = scalar_lea.sflag [#allocation7], %s396
        %s398 = sand.u32 %s68, 1
        %s399 = scalar_lea.vmem [#allocation6], %s398
        // Predicated region
        $region49: #{tpu_custom_call.1} parent=43 // pred_check
          %p400 = pneg %p81
        $region50: #{tpu_custom_call.1} parent=43 // pred_check_branch
          %402 = sbr.rel (%p400) target = $region52
        $region51: #{tpu_custom_call.1} parent=43 // pred_region
          %403 = dma.done %s397, 16
        $region52: #{tpu_custom_call.1} parent=43 // pred_fallthru
          _
        %s404 = sand.u32 %s27, 1
        %s405 = scalar_lea.sflag [#allocation7], %s404
        %s406 = sand.u32 %s122, 1
        %s407 = smul.addr %s406, 48
        %s408 = scalar_lea.vmem [#allocation8], %s407
        // Predicated region
        $region53: #{tpu_custom_call.1} parent=43 // pred_check
          %p409 = pneg %p135
        $region54: #{tpu_custom_call.1} parent=43 // pred_check_branch
          %411 = sbr.rel (%p409) target = $region56
        $region55: #{tpu_custom_call.1} parent=43 // pred_region
          %412 = dma.done %s405, 768
        $region56: #{tpu_custom_call.1} parent=43 // pred_fallthru
          _
        %s413 = sand.u32 %s27, 1
        %s414 = scalar_lea.sflag [#allocation10], %s413
        %s415 = sand.u32 %s158, 1
        %s416 = smul.addr %s415, 16
        %s417 = scalar_lea.vmem [#allocation9], %s416
        // Predicated region
        $region57: #{tpu_custom_call.1} parent=43 // pred_check
          %p418 = pneg %p171
        $region58: #{tpu_custom_call.1} parent=43 // pred_check_branch
          %420 = sbr.rel (%p418) target = $region60
        $region59: #{tpu_custom_call.1} parent=43 // pred_region
          %421 = dma.done %s414, 256
        $region60: #{tpu_custom_call.1} parent=43 // pred_fallthru
          _
        %s422 = sand.u32 %s27, 1
        %s423 = scalar_lea.sflag [#allocation10], %s422
        %s424 = sand.u32 %s194, 1
        %s425 = smul.addr %s424, 16
        %s426 = scalar_lea.vmem [#allocation11], %s425
        // Predicated region
        $region61: #{tpu_custom_call.1} parent=43 // pred_check
          %p427 = pneg %p207
        $region62: #{tpu_custom_call.1} parent=43 // pred_check_branch
          %429 = sbr.rel (%p427) target = $region64
        $region63: #{tpu_custom_call.1} parent=43 // pred_region
          %430 = dma.done %s423, 256
        $region64: #{tpu_custom_call.1} parent=43 // pred_fallthru
          _
        %p431 = pneg %p55
        %p432 = pneg %p52
        %s433 = sand.u32 %s27, 1
        %s434 = scalar_lea.sflag [#allocation7], %s433
        %s435 = sand.u32 %s68, 1
        %s436 = scalar_lea.vmem [#allocation6], %s435
        %p437 = pneg %p81
        %p438 = pneg %p78
        %p439 = scmp.lt.s32.totalorder %s31, 1
        %s440 = scalar_select %p439, %s31, 1
        %s441 = scalar_lea.vmem %s2, %s440
        %p442 = pneg %p107
        %p443 = pneg %p104
        %s444 = sand.u32 %s27, 1
        %s445 = scalar_lea.sflag [#allocation7], %s444
        %s446 = sand.u32 %s122, 1
        %s447 = smul.addr %s446, 48
        %s448 = scalar_lea.vmem [#allocation8], %s447
        %p449 = pneg %p135
        %p450 = pneg %p132
        %s451 = sand.u32 %s27, 1
        %s452 = scalar_lea.sflag [#allocation10], %s451
        %s453 = sand.u32 %s158, 1
        %s454 = smul.addr %s453, 16
        %s455 = scalar_lea.vmem [#allocation9], %s454
        %p456 = pneg %p171
        %p457 = pneg %p168
        %s458 = sand.u32 %s27, 1
        %s459 = scalar_lea.sflag [#allocation10], %s458
        %s460 = sand.u32 %s194, 1
        %s461 = smul.addr %s460, 16
        %s462 = scalar_lea.vmem [#allocation11], %s461
        %p463 = pneg %p207
        %p464 = pneg %p204
        %p465 = pneg %p235
        %p466 = pneg %p232
        %s467 = sand.u32 %s222, 1
        %s468 = scalar_lea.sflag [#allocation5], %s467
        %s469 = sand.u32 %s222, 1
        %s470 = smul.addr %s469, 48
        %s471 = scalar_lea.vmem [#allocation12], %s470
        %p472 = scmp.lt.s32.totalorder %s31, 1
        %s473 = scalar_select %p472, %s31, 1
        %s474 = scalar_lea.vmem %s2, %s473
        %s475 = smul.u32 6, %s32
        %s476 = ssub.s32 25, %s475
        %p477 = scmp.lt.s32.totalorder %s476, 6
        %s478 = scalar_select %p477, %s476, 6
        %s479 = smul.u32 128, %s478
        %s480 = smul.u32 %s32, 3
        %s481 = ssub.s32 %s480, 1
        %p482 = scmp.gt.s32.totalorder %s481, 0
        %s483 = scalar_select %p482, %s481, 0
        %s484 = smul.u32 2, %s483
        %s485 = ssub.s32 25, %s484
        %p486 = scmp.lt.s32.totalorder %s485, 2
        %s487 = scalar_select %p486, %s485, 2
        %s488 = smul.u32 128, %s487
        %s489 = sadd.s32 %s32, 1
        %s490 = smul.u32 %s489, 3
        %p491 = scmp.lt.s32.totalorder %s490, 12
        %s492 = scalar_select %p491, %s490, 12
        %s493 = smul.u32 2, %s492
        %s494 = ssub.s32 25, %s493
        %p495 = scmp.lt.s32.totalorder %s494, 2
        %s496 = scalar_select %p495, %s494, 2
        %s497 = smul.u32 128, %s496
        %s498 = smul.u32 6, %s32
        %s499 = ssub.s32 25, %s498
        %p500 = scmp.lt.s32.totalorder %s499, 6
        %s501 = scalar_select %p500, %s499, 6
        %s502 = smul.u32 128, %s501
        %s503 = smul.u32 %s32, 48
        %v504 = vld [vmem:[%s399] sm:$0x1]
        %v505 = vld [vmem:[%s474] sm:$0x1]
        %v506 = vlaneseq
        %v507 = vshrl.u32 %v506, 7
        %v508 = vadd.s32 %v507, 8
        %v509 = vadd.s32 %v507, 16
        %v510 = vadd.s32 %v507, 24
        %v511 = vadd.s32 %v507, 32
        %v512 = vadd.s32 %v507, 40
        %v513 = vstv %s503
        %v514 = vadd.s32 %v507, %v513
        %v515 = vadd.s32 %v508, %v513
        %v516 = vadd.s32 %v509, %v513
        %v517 = vadd.s32 %v510, %v513
        %v518 = vadd.s32 %v511, %v513
        %v519 = vadd.s32 %v512, %v513
        %vm520 = vcmp.ge.s32.totalorder %v514, 200
        %vm521 = vcmp.ge.s32.totalorder %v515, 200
        %vm522 = vcmp.ge.s32.totalorder %v516, 200
        %vm523 = vcmp.ge.s32.totalorder %v517, 200
        %vm524 = vcmp.ge.s32.totalorder %v518, 200
        %vm525 = vcmp.ge.s32.totalorder %v519, 200
        %v526 = vld [vmem:[%s408] sm:$0xff]
        %v527 = vld [vmem:[%s408 + $0x8] sm:$0xff]
        %v528 = vld [vmem:[%s408 + $0x10] sm:$0xff]
        %v529 = vld [vmem:[%s408 + $0x18] sm:$0xff]
        %v530 = vld [vmem:[%s408 + $0x20] sm:$0xff]
        %v531 = vld [vmem:[%s408 + $0x28] sm:$0xff]
        %v532 = vsel %vm520, 1, 0
        %v533 = vsel %vm521, 1, 0
        %v534 = vsel %vm522, 1, 0
        %v535 = vsel %vm523, 1, 0
        %v536 = vsel %vm524, 1, 0
        %v537 = vsel %vm525, 1, 0
        %vm538 = vcmp.eq.s32.totalorder %v532, 1
        %vm539 = vcmp.eq.s32.totalorder %v533, 1
        %vm540 = vcmp.eq.s32.totalorder %v534, 1
        %vm541 = vcmp.eq.s32.totalorder %v535, 1
        %vm542 = vcmp.eq.s32.totalorder %v536, 1
        %vm543 = vcmp.eq.s32.totalorder %v537, 1
        %v545 = vlaneseq
        %v546 = vshrl.u32 %v545, 7
        %v547 = vsub.s32 0, %v546
        %v548 = vrot.slane %v505, %v547
        %v550 = vsel %vm538, %v548, %v526
        %v551 = vsel %vm539, %v548, %v527
        %v552 = vsel %vm540, %v548, %v528
        %v553 = vsel %vm541, %v548, %v529
        %v554 = vsel %vm542, %v548, %v530
        %v555 = vsel %vm543, %v548, %v531
        %556 = vst [vmem:[#allocation2 + $0x10] sm:$0xff] %v550
        %557 = vst [vmem:[#allocation2 + $0x18] sm:$0xff] %v551
        %558 = vst [vmem:[#allocation2 + $0x20] sm:$0xff] %v552
        %559 = vst [vmem:[#allocation2 + $0x28] sm:$0xff] %v553
        %560 = vst [vmem:[#allocation2 + $0x30] sm:$0xff] %v554
        %561 = vst [vmem:[#allocation2 + $0x38] sm:$0xff] %v555
        %s562 = ssub.s32 %s503, 16
        %v563 = vstv %s562
        %v564 = vadd.s32 %v507, %v563
        %v565 = vadd.s32 %v508, %v563
        %vm566 = vcmp.lt.s32.totalorder %v564, 0
        %vm567 = vcmp.lt.s32.totalorder %v565, 0
        %v568 = vld [vmem:[%s417] sm:$0xff]
        %v569 = vld [vmem:[%s417 + $0x8] sm:$0xff]
        %v570 = vsel %vm566, 1, 0
        %v571 = vsel %vm567, 1, 0
        %vm572 = vcmp.eq.s32.totalorder %v570, 1
        %vm573 = vcmp.eq.s32.totalorder %v571, 1
        %v575 = vlaneseq
        %v576 = vshrl.u32 %v575, 7
        %v577 = vsub.s32 0, %v576
        %v578 = vrot.slane %v504, %v577
        %v580 = vsel %vm572, %v578, %v568
        %v581 = vsel %vm573, %v578, %v569
        %582 = vst [vmem:[#allocation2] sm:$0xff] %v580
        %583 = vst [vmem:[#allocation2 + $0x8] sm:$0xff] %v581
        %s584 = sadd.s32 %s503, 48
        %v585 = vstv %s584
        %v586 = vadd.s32 %v507, %v585
        %v587 = vadd.s32 %v508, %v585
        %vm588 = vcmp.ge.s32.totalorder %v586, 200
        %vm589 = vcmp.ge.s32.totalorder %v587, 200
        %v590 = vld [vmem:[%s426] sm:$0xff]
        %v591 = vld [vmem:[%s426 + $0x8] sm:$0xff]
        %v592 = vsel %vm588, 1, 0
        %v593 = vsel %vm589, 1, 0
        %vm594 = vcmp.eq.s32.totalorder %v592, 1
        %vm595 = vcmp.eq.s32.totalorder %v593, 1
        %v596 = vsel %vm594, %v548, %v590
        %v597 = vsel %vm595, %v548, %v591
        %598 = vst [vmem:[#allocation2 + $0x40] sm:$0xff] %v596
        %599 = vst [vmem:[#allocation2 + $0x48] sm:$0xff] %v597
        %v600 = vld [vmem:[#allocation3] sm:$0xff]
        %v601 = vld [vmem:[#allocation3 + $0x8] sm:$0xff]
        %v602 = vld [vmem:[#allocation2] sm:$0xff]
        %v603 = vld [vmem:[#allocation2 + $0x8] sm:$0xff]
        %v604 = vld [vmem:[#allocation2 + $0x10] sm:$0xff]
        %v605 = vld [vmem:[#allocation2 + $0x18] sm:$0xff]
        %v606 = vld [vmem:[#allocation2 + $0x20] sm:$0xff]
        %v607 = vld [vmem:[#allocation2 + $0x28] sm:$0xff]
        %vm608 = vcmask 392192
        %v610 = vsel %vm608, %v600, 0
        %v613 = vsel %vm608, %v601, 0
        %615 = vmatprep.subr.mxu0 0.0
        %616 = vmatpush1.msra.mxu0 0.0
        %617 = vmatprep.subr.mxu0 0.0
        %618 = vmatpush1.msra.mxu0 0.0
        %619 = vmatprep.subr.mxu0 0.0
        %620 = vmatpush1.msra.mxu0 0.0
        %621 = vmatprep.subr.mxu0 0.0
        %622 = vmatpush1.msra.mxu0 0.0
        %623 = vmatprep.subr.mxu0 0.0
        %624 = vmatpush1.msra.mxu0 0.0
        %625 = vmatprep.subr.mxu0 0.0
        %626 = vmatpush1.msra.mxu0 0.0
        %627 = vmatprep.subr.mxu0 0.0
        %628 = vmatpush1.msra.mxu0 0.0
        %629 = vmatprep.subr.mxu0 0.0
        %630 = vmatpush1.msra.mxu0 0.0
        %631 = vmatprep.subr.mxu0 0.0
        %632 = vmatpush1.msra.mxu0 0.0
        %633 = vmatprep.subr.mxu0 0.0
        %634 = vmatpush1.msra.mxu0 0.0
        %635 = vmatprep.subr.mxu0 0.0
        %v636 = vand.u32 %v607, 4294901760
        %637 = vmatpush1.msra.mxu0 %v636
        %638 = vmatprep.subr.mxu0 0.0
        %v639 = vand.u32 %v606, 4294901760
        %640 = vmatpush1.msra.mxu0 %v639
        %641 = vmatprep.subr.mxu0 0.0
        %v642 = vand.u32 %v605, 4294901760
        %643 = vmatpush1.msra.mxu0 %v642
        %644 = vmatprep.subr.mxu0 0.0
        %v645 = vand.u32 %v604, 4294901760
        %646 = vmatpush1.msra.mxu0 %v645
        %647 = vmatprep.subr.mxu0 0.0
        %v648 = vand.u32 %v603, 4294901760
        %649 = vmatpush1.msra.mxu0 %v648
        %650 = vmatprep.subr.mxu0 0.0
        %v651 = vand.u32 %v602, 4294901760
        %652 = vmatpush1.msra.mxu0 %v651
        %653 = vmatprep.subr.mxu0 0.0
        %654 = vmatpush2.msra.mxu0 0.0
        %655 = vmatprep.subr.mxu0 0.0
        %656 = vmatpush2.msra.mxu0 0.0
        %657 = vmatprep.subr.mxu0 0.0
        %658 = vmatpush2.msra.mxu0 0.0
        %659 = vmatprep.subr.mxu0 0.0
        %660 = vmatpush2.msra.mxu0 0.0
        %661 = vmatprep.subr.mxu0 0.0
        %662 = vmatpush2.msra.mxu0 0.0
        %663 = vmatprep.subr.mxu0 0.0
        %664 = vmatpush2.msra.mxu0 0.0
        %665 = vmatprep.subr.mxu0 0.0
        %666 = vmatpush2.msra.mxu0 0.0
        %667 = vmatprep.subr.mxu0 0.0
        %668 = vmatpush2.msra.mxu0 0.0
        %669 = vmatprep.subr.mxu0 0.0
        %670 = vmatpush2.msra.mxu0 0.0
        %671 = vmatprep.subr.mxu0 0.0
        %672 = vmatpush2.msra.mxu0 0.0
        %673 = vmatprep.subr.mxu0 0.0
        %674 = vmatpush2.msra.mxu0 0.0
        %675 = vmatprep.subr.mxu0 0.0
        %676 = vmatpush2.msra.mxu0 0.0
        %677 = vmatprep.subr.mxu0 0.0
        %678 = vmatpush2.msra.mxu0 0.0
        %679 = vmatprep.subr.mxu0 0.0
        %680 = vmatpush2.msra.mxu0 0.0
        %681 = vmatprep.subr.mxu0 0.0
        %682 = vmatpush2.msra.mxu0 0.0
        %683 = vmatprep.subr.mxu0 0.0
        %684 = vmatpush2.msra.mxu0 0.0
        %685 = vmatprep.mubr.f32.mxu0 0.0
        %v686 = vand.u32 %v610, 4294901760
        %v687 = vsub.f32 %v610, %v686
        %v688 = vand.u32 %v687, 4294901760
        %v689 = vsub.f32 %v687, %v688
        %v690 = vand.u32 %v689, 4294901760
        %691 = vmatmul.mubr.f32.gmra.mxu0 %v690
        %v692 = vpop.f32.mrf.mxu0
        %v693 = vadd.f32 0.0, %v692
        %v694 = vpop.f32.mrf.mxu0
        %695 = vmatprep.mubr.f32.mxu0 0.0
        %v696 = vand.u32 %v613, 4294901760
        %v697 = vsub.f32 %v613, %v696
        %v698 = vand.u32 %v697, 4294901760
        %v699 = vsub.f32 %v697, %v698
        %v700 = vand.u32 %v699, 4294901760
        %701 = vmatmul.mubr.f32.gmra.mxu0 %v700
        %v702 = vpop.f32.mrf.mxu0
        %v703 = vadd.f32 0.0, %v702
        %v704 = vpop.f32.mrf.mxu0
        %705 = vdwg.mxu0
        %706 = vmatprep.subr.mxu0 0.0
        %707 = vmatpush1.msra.mxu0 0.0
        %708 = vmatprep.subr.mxu0 0.0
        %709 = vmatpush1.msra.mxu0 0.0
        %710 = vmatprep.subr.mxu0 0.0
        %711 = vmatpush1.msra.mxu0 0.0
        %712 = vmatprep.subr.mxu0 0.0
        %713 = vmatpush1.msra.mxu0 0.0
        %714 = vmatprep.subr.mxu0 0.0
        %715 = vmatpush1.msra.mxu0 0.0
        %716 = vmatprep.subr.mxu0 0.0
        %717 = vmatpush1.msra.mxu0 0.0
        %718 = vmatprep.subr.mxu0 0.0
        %719 = vmatpush1.msra.mxu0 0.0
        %720 = vmatprep.subr.mxu0 0.0
        %721 = vmatpush1.msra.mxu0 0.0
        %722 = vmatprep.subr.mxu0 0.0
        %723 = vmatpush1.msra.mxu0 0.0
        %724 = vmatprep.subr.mxu0 0.0
        %725 = vmatpush1.msra.mxu0 0.0
        %726 = vmatprep.subr.mxu0 0.0
        %v727 = vand.u32 %v607, 4294901760
        %v728 = vsub.f32 %v607, %v727
        %v729 = vand.u32 %v728, 4294901760
        %v730 = vsub.f32 %v728, %v729
        %v731 = vand.u32 %v730, 4294901760
        %732 = vmatpush1.msra.mxu0 %v731
        %733 = vmatprep.subr.mxu0 0.0
        %v734 = vand.u32 %v606, 4294901760
        %v735 = vsub.f32 %v606, %v734
        %v736 = vand.u32 %v735, 4294901760
        %v737 = vsub.f32 %v735, %v736
        %v738 = vand.u32 %v737, 4294901760
        %739 = vmatpush1.msra.mxu0 %v738
        %740 = vmatprep.subr.mxu0 0.0
        %v741 = vand.u32 %v605, 4294901760
        %v742 = vsub.f32 %v605, %v741
        %v743 = vand.u32 %v742, 4294901760
        %v744 = vsub.f32 %v742, %v743
        %v745 = vand.u32 %v744, 4294901760
        %746 = vmatpush1.msra.mxu0 %v745
        %747 = vmatprep.subr.mxu0 0.0
        %v748 = vand.u32 %v604, 4294901760
        %v749 = vsub.f32 %v604, %v748
        %v750 = vand.u32 %v749, 4294901760
        %v751 = vsub.f32 %v749, %v750
        %v752 = vand.u32 %v751, 4294901760
        %753 = vmatpush1.msra.mxu0 %v752
        %754 = vmatprep.subr.mxu0 0.0
        %v755 = vand.u32 %v603, 4294901760
        %v756 = vsub.f32 %v603, %v755
        %v757 = vand.u32 %v756, 4294901760
        %v758 = vsub.f32 %v756, %v757
        %v759 = vand.u32 %v758, 4294901760
        %760 = vmatpush1.msra.mxu0 %v759
        %761 = vmatprep.subr.mxu0 0.0
        %v762 = vand.u32 %v602, 4294901760
        %v763 = vsub.f32 %v602, %v762
        %v764 = vand.u32 %v763, 4294901760
        %v765 = vsub.f32 %v763, %v764
        %v766 = vand.u32 %v765, 4294901760
        %767 = vmatpush1.msra.mxu0 %v766
        %768 = vmatprep.subr.mxu0 0.0
        %769 = vmatpush2.msra.mxu0 0.0
        %770 = vmatprep.subr.mxu0 0.0
        %771 = vmatpush2.msra.mxu0 0.0
        %772 = vmatprep.subr.mxu0 0.0
        %773 = vmatpush2.msra.mxu0 0.0
        %774 = vmatprep.subr.mxu0 0.0
        %775 = vmatpush2.msra.mxu0 0.0
        %776 = vmatprep.subr.mxu0 0.0
        %777 = vmatpush2.msra.mxu0 0.0
        %778 = vmatprep.subr.mxu0 0.0
        %779 = vmatpush2.msra.mxu0 0.0
        %780 = vmatprep.subr.mxu0 0.0
        %781 = vmatpush2.msra.mxu0 0.0
        %782 = vmatprep.subr.mxu0 0.0
        %783 = vmatpush2.msra.mxu0 0.0
        %784 = vmatprep.subr.mxu0 0.0
        %785 = vmatpush2.msra.mxu0 0.0
        %786 = vmatprep.subr.mxu0 0.0
        %787 = vmatpush2.msra.mxu0 0.0
        %788 = vmatprep.subr.mxu0 0.0
        %789 = vmatpush2.msra.mxu0 0.0
        %790 = vmatprep.subr.mxu0 0.0
        %791 = vmatpush2.msra.mxu0 0.0
        %792 = vmatprep.subr.mxu0 0.0
        %793 = vmatpush2.msra.mxu0 0.0
        %794 = vmatprep.subr.mxu0 0.0
        %795 = vmatpush2.msra.mxu0 0.0
        %796 = vmatprep.subr.mxu0 0.0
        %797 = vmatpush2.msra.mxu0 0.0
        %798 = vmatprep.subr.mxu0 0.0
        %799 = vmatpush2.msra.mxu0 0.0
        %800 = vmatprep.mubr.f32.mxu0 0.0
        %v801 = vand.u32 %v610, 4294901760
        %802 = vmatmul.mubr.f32.gmra.mxu0 %v801
        %v803 = vpop.f32.mrf.mxu0
        %v804 = vadd.f32 %v693, %v803
        %v805 = vpop.f32.mrf.mxu0
        %806 = vmatprep.mubr.f32.mxu0 0.0
        %v807 = vand.u32 %v613, 4294901760
        %808 = vmatmul.mubr.f32.gmra.mxu0 %v807
        %v809 = vpop.f32.mrf.mxu0
        %v810 = vadd.f32 %v703, %v809
        %v811 = vpop.f32.mrf.mxu0
        %812 = vdwg.mxu0
        %813 = vmatprep.subr.mxu0 0.0
        %814 = vmatpush1.msra.mxu0 0.0
        %815 = vmatprep.subr.mxu0 0.0
        %816 = vmatpush1.msra.mxu0 0.0
        %817 = vmatprep.subr.mxu0 0.0
        %818 = vmatpush1.msra.mxu0 0.0
        %819 = vmatprep.subr.mxu0 0.0
        %820 = vmatpush1.msra.mxu0 0.0
        %821 = vmatprep.subr.mxu0 0.0
        %822 = vmatpush1.msra.mxu0 0.0
        %823 = vmatprep.subr.mxu0 0.0
        %824 = vmatpush1.msra.mxu0 0.0
        %825 = vmatprep.subr.mxu0 0.0
        %826 = vmatpush1.msra.mxu0 0.0
        %827 = vmatprep.subr.mxu0 0.0
        %828 = vmatpush1.msra.mxu0 0.0
        %829 = vmatprep.subr.mxu0 0.0
        %830 = vmatpush1.msra.mxu0 0.0
        %831 = vmatprep.subr.mxu0 0.0
        %832 = vmatpush1.msra.mxu0 0.0
        %833 = vmatprep.subr.mxu0 0.0
        %v834 = vand.u32 %v607, 4294901760
        %v835 = vsub.f32 %v607, %v834
        %836 = vmatpush1.msra.mxu0 %v835
        %837 = vmatprep.subr.mxu0 0.0
        %v838 = vand.u32 %v606, 4294901760
        %v839 = vsub.f32 %v606, %v838
        %840 = vmatpush1.msra.mxu0 %v839
        %841 = vmatprep.subr.mxu0 0.0
        %v842 = vand.u32 %v605, 4294901760
        %v843 = vsub.f32 %v605, %v842
        %844 = vmatpush1.msra.mxu0 %v843
        %845 = vmatprep.subr.mxu0 0.0
        %v846 = vand.u32 %v604, 4294901760
        %v847 = vsub.f32 %v604, %v846
        %848 = vmatpush1.msra.mxu0 %v847
        %849 = vmatprep.subr.mxu0 0.0
        %v850 = vand.u32 %v603, 4294901760
        %v851 = vsub.f32 %v603, %v850
        %852 = vmatpush1.msra.mxu0 %v851
        %853 = vmatprep.subr.mxu0 0.0
        %v854 = vand.u32 %v602, 4294901760
        %v855 = vsub.f32 %v602, %v854
        %856 = vmatpush1.msra.mxu0 %v855
        %857 = vmatprep.subr.mxu0 0.0
        %858 = vmatpush2.msra.mxu0 0.0
        %859 = vmatprep.subr.mxu0 0.0
        %860 = vmatpush2.msra.mxu0 0.0
        %861 = vmatprep.subr.mxu0 0.0
        %862 = vmatpush2.msra.mxu0 0.0
        %863 = vmatprep.subr.mxu0 0.0
        %864 = vmatpush2.msra.mxu0 0.0
        %865 = vmatprep.subr.mxu0 0.0
        %866 = vmatpush2.msra.mxu0 0.0
        %867 = vmatprep.subr.mxu0 0.0
        %868 = vmatpush2.msra.mxu0 0.0
        %869 = vmatprep.subr.mxu0 0.0
        %870 = vmatpush2.msra.mxu0 0.0
        %871 = vmatprep.subr.mxu0 0.0
        %872 = vmatpush2.msra.mxu0 0.0
        %873 = vmatprep.subr.mxu0 0.0
        %874 = vmatpush2.msra.mxu0 0.0
        %875 = vmatprep.subr.mxu0 0.0
        %876 = vmatpush2.msra.mxu0 0.0
        %877 = vmatprep.subr.mxu0 0.0
        %878 = vmatpush2.msra.mxu0 0.0
        %879 = vmatprep.subr.mxu0 0.0
        %880 = vmatpush2.msra.mxu0 0.0
        %881 = vmatprep.subr.mxu0 0.0
        %882 = vmatpush2.msra.mxu0 0.0
        %883 = vmatprep.subr.mxu0 0.0
        %884 = vmatpush2.msra.mxu0 0.0
        %885 = vmatprep.subr.mxu0 0.0
        %886 = vmatpush2.msra.mxu0 0.0
        %887 = vmatprep.subr.mxu0 0.0
        %888 = vmatpush2.msra.mxu0 0.0
        %889 = vmatprep.mubr.f32.mxu0 0.0
        %v890 = vand.u32 %v610, 4294901760
        %v891 = vsub.f32 %v610, %v890
        %892 = vmatmul.mubr.f32.gmra.mxu0 %v891
        %v893 = vpop.f32.mrf.mxu0
        %v894 = vadd.f32 %v804, %v893
        %v895 = vpop.f32.mrf.mxu0
        %896 = vmatprep.mubr.f32.mxu0 0.0
        %v897 = vand.u32 %v613, 4294901760
        %v898 = vsub.f32 %v613, %v897
        %899 = vmatmul.mubr.f32.gmra.mxu0 %v898
        %v900 = vpop.f32.mrf.mxu0
        %v901 = vadd.f32 %v810, %v900
        %v902 = vpop.f32.mrf.mxu0
        %903 = vdwg.mxu0
        %904 = vmatprep.subr.mxu0 0.0
        %905 = vmatpush1.msra.mxu0 0.0
        %906 = vmatprep.subr.mxu0 0.0
        %907 = vmatpush1.msra.mxu0 0.0
        %908 = vmatprep.subr.mxu0 0.0
        %909 = vmatpush1.msra.mxu0 0.0
        %910 = vmatprep.subr.mxu0 0.0
        %911 = vmatpush1.msra.mxu0 0.0
        %912 = vmatprep.subr.mxu0 0.0
        %913 = vmatpush1.msra.mxu0 0.0
        %914 = vmatprep.subr.mxu0 0.0
        %915 = vmatpush1.msra.mxu0 0.0
        %916 = vmatprep.subr.mxu0 0.0
        %917 = vmatpush1.msra.mxu0 0.0
        %918 = vmatprep.subr.mxu0 0.0
        %919 = vmatpush1.msra.mxu0 0.0
        %920 = vmatprep.subr.mxu0 0.0
        %921 = vmatpush1.msra.mxu0 0.0
        %922 = vmatprep.subr.mxu0 0.0
        %923 = vmatpush1.msra.mxu0 0.0
        %924 = vmatprep.subr.mxu0 0.0
        %v925 = vand.u32 %v607, 4294901760
        %926 = vmatpush1.msra.mxu0 %v925
        %927 = vmatprep.subr.mxu0 0.0
        %v928 = vand.u32 %v606, 4294901760
        %929 = vmatpush1.msra.mxu0 %v928
        %930 = vmatprep.subr.mxu0 0.0
        %v931 = vand.u32 %v605, 4294901760
        %932 = vmatpush1.msra.mxu0 %v931
        %933 = vmatprep.subr.mxu0 0.0
        %v934 = vand.u32 %v604, 4294901760
        %935 = vmatpush1.msra.mxu0 %v934
        %936 = vmatprep.subr.mxu0 0.0
        %v937 = vand.u32 %v603, 4294901760
        %938 = vmatpush1.msra.mxu0 %v937
        %939 = vmatprep.subr.mxu0 0.0
        %v940 = vand.u32 %v602, 4294901760
        %941 = vmatpush1.msra.mxu0 %v940
        %942 = vmatprep.subr.mxu0 0.0
        %943 = vmatpush2.msra.mxu0 0.0
        %944 = vmatprep.subr.mxu0 0.0
        %945 = vmatpush2.msra.mxu0 0.0
        %946 = vmatprep.subr.mxu0 0.0
        %947 = vmatpush2.msra.mxu0 0.0
        %948 = vmatprep.subr.mxu0 0.0
        %949 = vmatpush2.msra.mxu0 0.0
        %950 = vmatprep.subr.mxu0 0.0
        %951 = vmatpush2.msra.mxu0 0.0
        %952 = vmatprep.subr.mxu0 0.0
        %953 = vmatpush2.msra.mxu0 0.0
        %954 = vmatprep.subr.mxu0 0.0
        %955 = vmatpush2.msra.mxu0 0.0
        %956 = vmatprep.subr.mxu0 0.0
        %957 = vmatpush2.msra.mxu0 0.0
        %958 = vmatprep.subr.mxu0 0.0
        %959 = vmatpush2.msra.mxu0 0.0
        %960 = vmatprep.subr.mxu0 0.0
        %961 = vmatpush2.msra.mxu0 0.0
        %962 = vmatprep.subr.mxu0 0.0
        %963 = vmatpush2.msra.mxu0 0.0
        %964 = vmatprep.subr.mxu0 0.0
        %965 = vmatpush2.msra.mxu0 0.0
        %966 = vmatprep.subr.mxu0 0.0
        %967 = vmatpush2.msra.mxu0 0.0
        %968 = vmatprep.subr.mxu0 0.0
        %969 = vmatpush2.msra.mxu0 0.0
        %970 = vmatprep.subr.mxu0 0.0
        %971 = vmatpush2.msra.mxu0 0.0
        %972 = vmatprep.subr.mxu0 0.0
        %973 = vmatpush2.msra.mxu0 0.0
        %974 = vmatprep.mubr.f32.mxu0 0.0
        %v975 = vand.u32 %v610, 4294901760
        %v976 = vsub.f32 %v610, %v975
        %v977 = vand.u32 %v976, 4294901760
        %978 = vmatmul.mubr.f32.gmra.mxu0 %v977
        %v979 = vpop.f32.mrf.mxu0
        %v980 = vadd.f32 %v894, %v979
        %v981 = vpop.f32.mrf.mxu0
        %982 = vmatprep.mubr.f32.mxu0 0.0
        %v983 = vand.u32 %v613, 4294901760
        %v984 = vsub.f32 %v613, %v983
        %v985 = vand.u32 %v984, 4294901760
        %986 = vmatmul.mubr.f32.gmra.mxu0 %v985
        %v987 = vpop.f32.mrf.mxu0
        %v988 = vadd.f32 %v901, %v987
        %v989 = vpop.f32.mrf.mxu0
        %990 = vdwg.mxu0
        %991 = vmatprep.subr.mxu0 0.0
        %992 = vmatpush1.msra.mxu0 0.0
        %993 = vmatprep.subr.mxu0 0.0
        %994 = vmatpush1.msra.mxu0 0.0
        %995 = vmatprep.subr.mxu0 0.0
        %996 = vmatpush1.msra.mxu0 0.0
        %997 = vmatprep.subr.mxu0 0.0
        %998 = vmatpush1.msra.mxu0 0.0
        %999 = vmatprep.subr.mxu0 0.0
        %1000 = vmatpush1.msra.mxu0 0.0
        %1001 = vmatprep.subr.mxu0 0.0
        %1002 = vmatpush1.msra.mxu0 0.0
        %1003 = vmatprep.subr.mxu0 0.0
        %1004 = vmatpush1.msra.mxu0 0.0
        %1005 = vmatprep.subr.mxu0 0.0
        %1006 = vmatpush1.msra.mxu0 0.0
        %1007 = vmatprep.subr.mxu0 0.0
        %1008 = vmatpush1.msra.mxu0 0.0
        %1009 = vmatprep.subr.mxu0 0.0
        %1010 = vmatpush1.msra.mxu0 0.0
        %1011 = vmatprep.subr.mxu0 0.0
        %v1012 = vand.u32 %v607, 4294901760
        %v1013 = vsub.f32 %v607, %v1012
        %v1014 = vand.u32 %v1013, 4294901760
        %1015 = vmatpush1.msra.mxu0 %v1014
        %1016 = vmatprep.subr.mxu0 0.0
        %v1017 = vand.u32 %v606, 4294901760
        %v1018 = vsub.f32 %v606, %v1017
        %v1019 = vand.u32 %v1018, 4294901760
        %1020 = vmatpush1.msra.mxu0 %v1019
        %1021 = vmatprep.subr.mxu0 0.0
        %v1022 = vand.u32 %v605, 4294901760
        %v1023 = vsub.f32 %v605, %v1022
        %v1024 = vand.u32 %v1023, 4294901760
        %1025 = vmatpush1.msra.mxu0 %v1024
        %1026 = vmatprep.subr.mxu0 0.0
        %v1027 = vand.u32 %v604, 4294901760
        %v1028 = vsub.f32 %v604, %v1027
        %v1029 = vand.u32 %v1028, 4294901760
        %1030 = vmatpush1.msra.mxu0 %v1029
        %1031 = vmatprep.subr.mxu0 0.0
        %v1032 = vand.u32 %v603, 4294901760
        %v1033 = vsub.f32 %v603, %v1032
        %v1034 = vand.u32 %v1033, 4294901760
        %1035 = vmatpush1.msra.mxu0 %v1034
        %1036 = vmatprep.subr.mxu0 0.0
        %v1037 = vand.u32 %v602, 4294901760
        %v1038 = vsub.f32 %v602, %v1037
        %v1039 = vand.u32 %v1038, 4294901760
        %1040 = vmatpush1.msra.mxu0 %v1039
        %1041 = vmatprep.subr.mxu0 0.0
        %1042 = vmatpush2.msra.mxu0 0.0
        %1043 = vmatprep.subr.mxu0 0.0
        %1044 = vmatpush2.msra.mxu0 0.0
        %1045 = vmatprep.subr.mxu0 0.0
        %1046 = vmatpush2.msra.mxu0 0.0
        %1047 = vmatprep.subr.mxu0 0.0
        %1048 = vmatpush2.msra.mxu0 0.0
        %1049 = vmatprep.subr.mxu0 0.0
        %1050 = vmatpush2.msra.mxu0 0.0
        %1051 = vmatprep.subr.mxu0 0.0
        %1052 = vmatpush2.msra.mxu0 0.0
        %1053 = vmatprep.subr.mxu0 0.0
        %1054 = vmatpush2.msra.mxu0 0.0
        %1055 = vmatprep.subr.mxu0 0.0
        %1056 = vmatpush2.msra.mxu0 0.0
        %1057 = vmatprep.subr.mxu0 0.0
        %1058 = vmatpush2.msra.mxu0 0.0
        %1059 = vmatprep.subr.mxu0 0.0
        %1060 = vmatpush2.msra.mxu0 0.0
        %1061 = vmatprep.subr.mxu0 0.0
        %1062 = vmatpush2.msra.mxu0 0.0
        %1063 = vmatprep.subr.mxu0 0.0
        %1064 = vmatpush2.msra.mxu0 0.0
        %1065 = vmatprep.subr.mxu0 0.0
        %1066 = vmatpush2.msra.mxu0 0.0
        %1067 = vmatprep.subr.mxu0 0.0
        %1068 = vmatpush2.msra.mxu0 0.0
        %1069 = vmatprep.subr.mxu0 0.0
        %1070 = vmatpush2.msra.mxu0 0.0
        %1071 = vmatprep.subr.mxu0 0.0
        %1072 = vmatpush2.msra.mxu0 0.0
        %1073 = vmatprep.mubr.f32.mxu0 0.0
        %v1074 = vand.u32 %v610, 4294901760
        %1075 = vmatmul.mubr.f32.gmra.mxu0 %v1074
        %v1076 = vpop.f32.mrf.mxu0
        %v1077 = vadd.f32 %v980, %v1076
        %v1078 = vpop.f32.mrf.mxu0
        %1079 = vmatprep.mubr.f32.mxu0 0.0
        %v1080 = vand.u32 %v613, 4294901760
        %1081 = vmatmul.mubr.f32.gmra.mxu0 %v1080
        %v1082 = vpop.f32.mrf.mxu0
        %v1083 = vadd.f32 %v988, %v1082
        %v1084 = vpop.f32.mrf.mxu0
        %1085 = vdwg.mxu0
        %1086 = vmatprep.subr.mxu0 0.0
        %1087 = vmatpush1.msra.mxu0 0.0
        %1088 = vmatprep.subr.mxu0 0.0
        %1089 = vmatpush1.msra.mxu0 0.0
        %1090 = vmatprep.subr.mxu0 0.0
        %1091 = vmatpush1.msra.mxu0 0.0
        %1092 = vmatprep.subr.mxu0 0.0
        %1093 = vmatpush1.msra.mxu0 0.0
        %1094 = vmatprep.subr.mxu0 0.0
        %1095 = vmatpush1.msra.mxu0 0.0
        %1096 = vmatprep.subr.mxu0 0.0
        %1097 = vmatpush1.msra.mxu0 0.0
        %1098 = vmatprep.subr.mxu0 0.0
        %1099 = vmatpush1.msra.mxu0 0.0
        %1100 = vmatprep.subr.mxu0 0.0
        %1101 = vmatpush1.msra.mxu0 0.0
        %1102 = vmatprep.subr.mxu0 0.0
        %1103 = vmatpush1.msra.mxu0 0.0
        %1104 = vmatprep.subr.mxu0 0.0
        %1105 = vmatpush1.msra.mxu0 0.0
        %1106 = vmatprep.subr.mxu0 0.0
        %v1107 = vand.u32 %v607, 4294901760
        %1108 = vmatpush1.msra.mxu0 %v1107
        %1109 = vmatprep.subr.mxu0 0.0
        %v1110 = vand.u32 %v606, 4294901760
        %1111 = vmatpush1.msra.mxu0 %v1110
        %1112 = vmatprep.subr.mxu0 0.0
        %v1113 = vand.u32 %v605, 4294901760
        %1114 = vmatpush1.msra.mxu0 %v1113
        %1115 = vmatprep.subr.mxu0 0.0
        %v1116 = vand.u32 %v604, 4294901760
        %1117 = vmatpush1.msra.mxu0 %v1116
        %1118 = vmatprep.subr.mxu0 0.0
        %v1119 = vand.u32 %v603, 4294901760
        %1120 = vmatpush1.msra.mxu0 %v1119
        %1121 = vmatprep.subr.mxu0 0.0
        %v1122 = vand.u32 %v602, 4294901760
        %1123 = vmatpush1.msra.mxu0 %v1122
        %1124 = vmatprep.subr.mxu0 0.0
        %1125 = vmatpush2.msra.mxu0 0.0
        %1126 = vmatprep.subr.mxu0 0.0
        %1127 = vmatpush2.msra.mxu0 0.0
        %1128 = vmatprep.subr.mxu0 0.0
        %1129 = vmatpush2.msra.mxu0 0.0
        %1130 = vmatprep.subr.mxu0 0.0
        %1131 = vmatpush2.msra.mxu0 0.0
        %1132 = vmatprep.subr.mxu0 0.0
        %1133 = vmatpush2.msra.mxu0 0.0
        %1134 = vmatprep.subr.mxu0 0.0
        %1135 = vmatpush2.msra.mxu0 0.0
        %1136 = vmatprep.subr.mxu0 0.0
        %1137 = vmatpush2.msra.mxu0 0.0
        %1138 = vmatprep.subr.mxu0 0.0
        %1139 = vmatpush2.msra.mxu0 0.0
        %1140 = vmatprep.subr.mxu0 0.0
        %1141 = vmatpush2.msra.mxu0 0.0
        %1142 = vmatprep.subr.mxu0 0.0
        %1143 = vmatpush2.msra.mxu0 0.0
        %1144 = vmatprep.subr.mxu0 0.0
        %1145 = vmatpush2.msra.mxu0 0.0
        %1146 = vmatprep.subr.mxu0 0.0
        %1147 = vmatpush2.msra.mxu0 0.0
        %1148 = vmatprep.subr.mxu0 0.0
        %1149 = vmatpush2.msra.mxu0 0.0
        %1150 = vmatprep.subr.mxu0 0.0
        %1151 = vmatpush2.msra.mxu0 0.0
        %1152 = vmatprep.subr.mxu0 0.0
        %1153 = vmatpush2.msra.mxu0 0.0
        %1154 = vmatprep.subr.mxu0 0.0
        %1155 = vmatpush2.msra.mxu0 0.0
        %1156 = vmatprep.mubr.f32.mxu0 0.0
        %v1157 = vand.u32 %v610, 4294901760
        %1158 = vmatmul.mubr.f32.gmra.mxu0 %v1157
        %v1159 = vpop.f32.mrf.mxu0
        %v1160 = vadd.f32 %v1077, %v1159
        %v1161 = vpop.f32.mrf.mxu0
        %1162 = vmatprep.mubr.f32.mxu0 0.0
        %v1163 = vand.u32 %v613, 4294901760
        %1164 = vmatmul.mubr.f32.gmra.mxu0 %v1163
        %v1165 = vpop.f32.mrf.mxu0
        %v1166 = vadd.f32 %v1083, %v1165
        %v1167 = vpop.f32.mrf.mxu0
        %1168 = vdwg.mxu0
        %v1169 = vmul.f32 %v1160, 0.04
        %v1170 = vmul.f32 %v1166, 0.04
        %1171 = vst [vmem:[%s471] sm:$0xff] %v1169
        %1172 = vst [vmem:[%s471 + $0x8] sm:$0xff] %v1170
        %v1173 = vld [vmem:[#allocation2 + $0x10] sm:$0xff]
        %v1174 = vld [vmem:[#allocation2 + $0x18] sm:$0xff]
        %v1175 = vld [vmem:[#allocation2 + $0x20] sm:$0xff]
        %v1176 = vld [vmem:[#allocation2 + $0x28] sm:$0xff]
        %v1177 = vld [vmem:[#allocation2 + $0x30] sm:$0xff]
        %v1178 = vld [vmem:[#allocation2 + $0x38] sm:$0xff]
        %1179 = vmatprep.subr.mxu0 0.0
        %1180 = vmatpush1.msra.mxu0 0.0
        %1181 = vmatprep.subr.mxu0 0.0
        %1182 = vmatpush1.msra.mxu0 0.0
        %1183 = vmatprep.subr.mxu0 0.0
        %1184 = vmatpush1.msra.mxu0 0.0
        %1185 = vmatprep.subr.mxu0 0.0
        %1186 = vmatpush1.msra.mxu0 0.0
        %1187 = vmatprep.subr.mxu0 0.0
        %1188 = vmatpush1.msra.mxu0 0.0
        %1189 = vmatprep.subr.mxu0 0.0
        %1190 = vmatpush1.msra.mxu0 0.0
        %1191 = vmatprep.subr.mxu0 0.0
        %1192 = vmatpush1.msra.mxu0 0.0
        %1193 = vmatprep.subr.mxu0 0.0
        %1194 = vmatpush1.msra.mxu0 0.0
        %1195 = vmatprep.subr.mxu0 0.0
        %1196 = vmatpush1.msra.mxu0 0.0
        %1197 = vmatprep.subr.mxu0 0.0
        %1198 = vmatpush1.msra.mxu0 0.0
        %1199 = vmatprep.subr.mxu0 0.0
        %v1200 = vand.u32 %v1178, 4294901760
        %1201 = vmatpush1.msra.mxu0 %v1200
        %1202 = vmatprep.subr.mxu0 0.0
        %v1203 = vand.u32 %v1177, 4294901760
        %1204 = vmatpush1.msra.mxu0 %v1203
        %1205 = vmatprep.subr.mxu0 0.0
        %v1206 = vand.u32 %v1176, 4294901760
        %1207 = vmatpush1.msra.mxu0 %v1206
        %1208 = vmatprep.subr.mxu0 0.0
        %v1209 = vand.u32 %v1175, 4294901760
        %1210 = vmatpush1.msra.mxu0 %v1209
        %1211 = vmatprep.subr.mxu0 0.0
        %v1212 = vand.u32 %v1174, 4294901760
        %1213 = vmatpush1.msra.mxu0 %v1212
        %1214 = vmatprep.subr.mxu0 0.0
        %v1215 = vand.u32 %v1173, 4294901760
        %1216 = vmatpush1.msra.mxu0 %v1215
        %1217 = vmatprep.subr.mxu0 0.0
        %1218 = vmatpush2.msra.mxu0 0.0
        %1219 = vmatprep.subr.mxu0 0.0
        %1220 = vmatpush2.msra.mxu0 0.0
        %1221 = vmatprep.subr.mxu0 0.0
        %1222 = vmatpush2.msra.mxu0 0.0
        %1223 = vmatprep.subr.mxu0 0.0
        %1224 = vmatpush2.msra.mxu0 0.0
        %1225 = vmatprep.subr.mxu0 0.0
        %1226 = vmatpush2.msra.mxu0 0.0
        %1227 = vmatprep.subr.mxu0 0.0
        %1228 = vmatpush2.msra.mxu0 0.0
        %1229 = vmatprep.subr.mxu0 0.0
        %1230 = vmatpush2.msra.mxu0 0.0
        %1231 = vmatprep.subr.mxu0 0.0
        %1232 = vmatpush2.msra.mxu0 0.0
        %1233 = vmatprep.subr.mxu0 0.0
        %1234 = vmatpush2.msra.mxu0 0.0
        %1235 = vmatprep.subr.mxu0 0.0
        %1236 = vmatpush2.msra.mxu0 0.0
        %1237 = vmatprep.subr.mxu0 0.0
        %1238 = vmatpush2.msra.mxu0 0.0
        %1239 = vmatprep.subr.mxu0 0.0
        %1240 = vmatpush2.msra.mxu0 0.0
        %1241 = vmatprep.subr.mxu0 0.0
        %1242 = vmatpush2.msra.mxu0 0.0
        %1243 = vmatprep.subr.mxu0 0.0
        %1244 = vmatpush2.msra.mxu0 0.0
        %1245 = vmatprep.subr.mxu0 0.0
        %1246 = vmatpush2.msra.mxu0 0.0
        %1247 = vmatprep.subr.mxu0 0.0
        %1248 = vmatpush2.msra.mxu0 0.0
        %1249 = vmatprep.mubr.f32.mxu0 0.0
        %v1250 = vand.u32 %v610, 4294901760
        %v1251 = vsub.f32 %v610, %v1250
        %v1252 = vand.u32 %v1251, 4294901760
        %v1253 = vsub.f32 %v1251, %v1252
        %v1254 = vand.u32 %v1253, 4294901760
        %1255 = vmatmul.mubr.f32.gmra.mxu0 %v1254
        %v1256 = vpop.f32.mrf.mxu0
        %v1257 = vadd.f32 0.0, %v1256
        %v1258 = vpop.f32.mrf.mxu0
        %1259 = vmatprep.mubr.f32.mxu0 0.0
        %v1260 = vand.u32 %v613, 4294901760
        %v1261 = vsub.f32 %v613, %v1260
        %v1262 = vand.u32 %v1261, 4294901760
        %v1263 = vsub.f32 %v1261, %v1262
        %v1264 = vand.u32 %v1263, 4294901760
        %1265 = vmatmul.mubr.f32.gmra.mxu0 %v1264
        %v1266 = vpop.f32.mrf.mxu0
        %v1267 = vadd.f32 0.0, %v1266
        %v1268 = vpop.f32.mrf.mxu0
        %1269 = vdwg.mxu0
        %1270 = vmatprep.subr.mxu0 0.0
        %1271 = vmatpush1.msra.mxu0 0.0
        %1272 = vmatprep.subr.mxu0 0.0
        %1273 = vmatpush1.msra.mxu0 0.0
        %1274 = vmatprep.subr.mxu0 0.0
        %1275 = vmatpush1.msra.mxu0 0.0
        %1276 = vmatprep.subr.mxu0 0.0
        %1277 = vmatpush1.msra.mxu0 0.0
        %1278 = vmatprep.subr.mxu0 0.0
        %1279 = vmatpush1.msra.mxu0 0.0
        %1280 = vmatprep.subr.mxu0 0.0
        %1281 = vmatpush1.msra.mxu0 0.0
        %1282 = vmatprep.subr.mxu0 0.0
        %1283 = vmatpush1.msra.mxu0 0.0
        %1284 = vmatprep.subr.mxu0 0.0
        %1285 = vmatpush1.msra.mxu0 0.0
        %1286 = vmatprep.subr.mxu0 0.0
        %1287 = vmatpush1.msra.mxu0 0.0
        %1288 = vmatprep.subr.mxu0 0.0
        %1289 = vmatpush1.msra.mxu0 0.0
        %1290 = vmatprep.subr.mxu0 0.0
        %v1291 = vand.u32 %v1178, 4294901760
        %v1292 = vsub.f32 %v1178, %v1291
        %v1293 = vand.u32 %v1292, 4294901760
        %v1294 = vsub.f32 %v1292, %v1293
        %v1295 = vand.u32 %v1294, 4294901760
        %1296 = vmatpush1.msra.mxu0 %v1295
        %1297 = vmatprep.subr.mxu0 0.0
        %v1298 = vand.u32 %v1177, 4294901760
        %v1299 = vsub.f32 %v1177, %v1298
        %v1300 = vand.u32 %v1299, 4294901760
        %v1301 = vsub.f32 %v1299, %v1300
        %v1302 = vand.u32 %v1301, 4294901760
        %1303 = vmatpush1.msra.mxu0 %v1302
        %1304 = vmatprep.subr.mxu0 0.0
        %v1305 = vand.u32 %v1176, 4294901760
        %v1306 = vsub.f32 %v1176, %v1305
        %v1307 = vand.u32 %v1306, 4294901760
        %v1308 = vsub.f32 %v1306, %v1307
        %v1309 = vand.u32 %v1308, 4294901760
        %1310 = vmatpush1.msra.mxu0 %v1309
        %1311 = vmatprep.subr.mxu0 0.0
        %v1312 = vand.u32 %v1175, 4294901760
        %v1313 = vsub.f32 %v1175, %v1312
        %v1314 = vand.u32 %v1313, 4294901760
        %v1315 = vsub.f32 %v1313, %v1314
        %v1316 = vand.u32 %v1315, 4294901760
        %1317 = vmatpush1.msra.mxu0 %v1316
        %1318 = vmatprep.subr.mxu0 0.0
        %v1319 = vand.u32 %v1174, 4294901760
        %v1320 = vsub.f32 %v1174, %v1319
        %v1321 = vand.u32 %v1320, 4294901760
        %v1322 = vsub.f32 %v1320, %v1321
        %v1323 = vand.u32 %v1322, 4294901760
        %1324 = vmatpush1.msra.mxu0 %v1323
        %1325 = vmatprep.subr.mxu0 0.0
        %v1326 = vand.u32 %v1173, 4294901760
        %v1327 = vsub.f32 %v1173, %v1326
        %v1328 = vand.u32 %v1327, 4294901760
        %v1329 = vsub.f32 %v1327, %v1328
        %v1330 = vand.u32 %v1329, 4294901760
        %1331 = vmatpush1.msra.mxu0 %v1330
        %1332 = vmatprep.subr.mxu0 0.0
        %1333 = vmatpush2.msra.mxu0 0.0
        %1334 = vmatprep.subr.mxu0 0.0
        %1335 = vmatpush2.msra.mxu0 0.0
        %1336 = vmatprep.subr.mxu0 0.0
        %1337 = vmatpush2.msra.mxu0 0.0
        %1338 = vmatprep.subr.mxu0 0.0
        %1339 = vmatpush2.msra.mxu0 0.0
        %1340 = vmatprep.subr.mxu0 0.0
        %1341 = vmatpush2.msra.mxu0 0.0
        %1342 = vmatprep.subr.mxu0 0.0
        %1343 = vmatpush2.msra.mxu0 0.0
        %1344 = vmatprep.subr.mxu0 0.0
        %1345 = vmatpush2.msra.mxu0 0.0
        %1346 = vmatprep.subr.mxu0 0.0
        %1347 = vmatpush2.msra.mxu0 0.0
        %1348 = vmatprep.subr.mxu0 0.0
        %1349 = vmatpush2.msra.mxu0 0.0
        %1350 = vmatprep.subr.mxu0 0.0
        %1351 = vmatpush2.msra.mxu0 0.0
        %1352 = vmatprep.subr.mxu0 0.0
        %1353 = vmatpush2.msra.mxu0 0.0
        %1354 = vmatprep.subr.mxu0 0.0
        %1355 = vmatpush2.msra.mxu0 0.0
        %1356 = vmatprep.subr.mxu0 0.0
        %1357 = vmatpush2.msra.mxu0 0.0
        %1358 = vmatprep.subr.mxu0 0.0
        %1359 = vmatpush2.msra.mxu0 0.0
        %1360 = vmatprep.subr.mxu0 0.0
        %1361 = vmatpush2.msra.mxu0 0.0
        %1362 = vmatprep.subr.mxu0 0.0
        %1363 = vmatpush2.msra.mxu0 0.0
        %1364 = vmatprep.mubr.f32.mxu0 0.0
        %v1365 = vand.u32 %v610, 4294901760
        %1366 = vmatmul.mubr.f32.gmra.mxu0 %v1365
        %v1367 = vpop.f32.mrf.mxu0
        %v1368 = vadd.f32 %v1257, %v1367
        %v1369 = vpop.f32.mrf.mxu0
        %1370 = vmatprep.mubr.f32.mxu0 0.0
        %v1371 = vand.u32 %v613, 4294901760
        %1372 = vmatmul.mubr.f32.gmra.mxu0 %v1371
        %v1373 = vpop.f32.mrf.mxu0
        %v1374 = vadd.f32 %v1267, %v1373
        %v1375 = vpop.f32.mrf.mxu0
        %1376 = vdwg.mxu0
        %1377 = vmatprep.subr.mxu0 0.0
        %1378 = vmatpush1.msra.mxu0 0.0
        %1379 = vmatprep.subr.mxu0 0.0
        %1380 = vmatpush1.msra.mxu0 0.0
        %1381 = vmatprep.subr.mxu0 0.0
        %1382 = vmatpush1.msra.mxu0 0.0
        %1383 = vmatprep.subr.mxu0 0.0
        %1384 = vmatpush1.msra.mxu0 0.0
        %1385 = vmatprep.subr.mxu0 0.0
        %1386 = vmatpush1.msra.mxu0 0.0
        %1387 = vmatprep.subr.mxu0 0.0
        %1388 = vmatpush1.msra.mxu0 0.0
        %1389 = vmatprep.subr.mxu0 0.0
        %1390 = vmatpush1.msra.mxu0 0.0
        %1391 = vmatprep.subr.mxu0 0.0
        %1392 = vmatpush1.msra.mxu0 0.0
        %1393 = vmatprep.subr.mxu0 0.0
        %1394 = vmatpush1.msra.mxu0 0.0
        %1395 = vmatprep.subr.mxu0 0.0
        %1396 = vmatpush1.msra.mxu0 0.0
        %1397 = vmatprep.subr.mxu0 0.0
        %v1398 = vand.u32 %v1178, 4294901760
        %v1399 = vsub.f32 %v1178, %v1398
        %1400 = vmatpush1.msra.mxu0 %v1399
        %1401 = vmatprep.subr.mxu0 0.0
        %v1402 = vand.u32 %v1177, 4294901760
        %v1403 = vsub.f32 %v1177, %v1402
        %1404 = vmatpush1.msra.mxu0 %v1403
        %1405 = vmatprep.subr.mxu0 0.0
        %v1406 = vand.u32 %v1176, 4294901760
        %v1407 = vsub.f32 %v1176, %v1406
        %1408 = vmatpush1.msra.mxu0 %v1407
        %1409 = vmatprep.subr.mxu0 0.0
        %v1410 = vand.u32 %v1175, 4294901760
        %v1411 = vsub.f32 %v1175, %v1410
        %1412 = vmatpush1.msra.mxu0 %v1411
        %1413 = vmatprep.subr.mxu0 0.0
        %v1414 = vand.u32 %v1174, 4294901760
        %v1415 = vsub.f32 %v1174, %v1414
        %1416 = vmatpush1.msra.mxu0 %v1415
        %1417 = vmatprep.subr.mxu0 0.0
        %v1418 = vand.u32 %v1173, 4294901760
        %v1419 = vsub.f32 %v1173, %v1418
        %1420 = vmatpush1.msra.mxu0 %v1419
        %1421 = vmatprep.subr.mxu0 0.0
        %1422 = vmatpush2.msra.mxu0 0.0
        %1423 = vmatprep.subr.mxu0 0.0
        %1424 = vmatpush2.msra.mxu0 0.0
        %1425 = vmatprep.subr.mxu0 0.0
        %1426 = vmatpush2.msra.mxu0 0.0
        %1427 = vmatprep.subr.mxu0 0.0
        %1428 = vmatpush2.msra.mxu0 0.0
        %1429 = vmatprep.subr.mxu0 0.0
        %1430 = vmatpush2.msra.mxu0 0.0
        %1431 = vmatprep.subr.mxu0 0.0
        %1432 = vmatpush2.msra.mxu0 0.0
        %1433 = vmatprep.subr.mxu0 0.0
        %1434 = vmatpush2.msra.mxu0 0.0
        %1435 = vmatprep.subr.mxu0 0.0
        %1436 = vmatpush2.msra.mxu0 0.0
        %1437 = vmatprep.subr.mxu0 0.0
        %1438 = vmatpush2.msra.mxu0 0.0
        %1439 = vmatprep.subr.mxu0 0.0
        %1440 = vmatpush2.msra.mxu0 0.0
        %1441 = vmatprep.subr.mxu0 0.0
        %1442 = vmatpush2.msra.mxu0 0.0
        %1443 = vmatprep.subr.mxu0 0.0
        %1444 = vmatpush2.msra.mxu0 0.0
        %1445 = vmatprep.subr.mxu0 0.0
        %1446 = vmatpush2.msra.mxu0 0.0
        %1447 = vmatprep.subr.mxu0 0.0
        %1448 = vmatpush2.msra.mxu0 0.0
        %1449 = vmatprep.subr.mxu0 0.0
        %1450 = vmatpush2.msra.mxu0 0.0
        %1451 = vmatprep.subr.mxu0 0.0
        %1452 = vmatpush2.msra.mxu0 0.0
        %1453 = vmatprep.mubr.f32.mxu0 0.0
        %v1454 = vand.u32 %v610, 4294901760
        %v1455 = vsub.f32 %v610, %v1454
        %1456 = vmatmul.mubr.f32.gmra.mxu0 %v1455
        %v1457 = vpop.f32.mrf.mxu0
        %v1458 = vadd.f32 %v1368, %v1457
        %v1459 = vpop.f32.mrf.mxu0
        %1460 = vmatprep.mubr.f32.mxu0 0.0
        %v1461 = vand.u32 %v613, 4294901760
        %v1462 = vsub.f32 %v613, %v1461
        %1463 = vmatmul.mubr.f32.gmra.mxu0 %v1462
        %v1464 = vpop.f32.mrf.mxu0
        %v1465 = vadd.f32 %v1374, %v1464
        %v1466 = vpop.f32.mrf.mxu0
        %1467 = vdwg.mxu0
        %1468 = vmatprep.subr.mxu0 0.0
        %1469 = vmatpush1.msra.mxu0 0.0
        %1470 = vmatprep.subr.mxu0 0.0
        %1471 = vmatpush1.msra.mxu0 0.0
        %1472 = vmatprep.subr.mxu0 0.0
        %1473 = vmatpush1.msra.mxu0 0.0
        %1474 = vmatprep.subr.mxu0 0.0
        %1475 = vmatpush1.msra.mxu0 0.0
        %1476 = vmatprep.subr.mxu0 0.0
        %1477 = vmatpush1.msra.mxu0 0.0
        %1478 = vmatprep.subr.mxu0 0.0
        %1479 = vmatpush1.msra.mxu0 0.0
        %1480 = vmatprep.subr.mxu0 0.0
        %1481 = vmatpush1.msra.mxu0 0.0
        %1482 = vmatprep.subr.mxu0 0.0
        %1483 = vmatpush1.msra.mxu0 0.0
        %1484 = vmatprep.subr.mxu0 0.0
        %1485 = vmatpush1.msra.mxu0 0.0
        %1486 = vmatprep.subr.mxu0 0.0
        %1487 = vmatpush1.msra.mxu0 0.0
        %1488 = vmatprep.subr.mxu0 0.0
        %v1489 = vand.u32 %v1178, 4294901760
        %1490 = vmatpush1.msra.mxu0 %v1489
        %1491 = vmatprep.subr.mxu0 0.0
        %v1492 = vand.u32 %v1177, 4294901760
        %1493 = vmatpush1.msra.mxu0 %v1492
        %1494 = vmatprep.subr.mxu0 0.0
        %v1495 = vand.u32 %v1176, 4294901760
        %1496 = vmatpush1.msra.mxu0 %v1495
        %1497 = vmatprep.subr.mxu0 0.0
        %v1498 = vand.u32 %v1175, 4294901760
        %1499 = vmatpush1.msra.mxu0 %v1498
        %1500 = vmatprep.subr.mxu0 0.0
        %v1501 = vand.u32 %v1174, 4294901760
        %1502 = vmatpush1.msra.mxu0 %v1501
        %1503 = vmatprep.subr.mxu0 0.0
        %v1504 = vand.u32 %v1173, 4294901760
        %1505 = vmatpush1.msra.mxu0 %v1504
        %1506 = vmatprep.subr.mxu0 0.0
        %1507 = vmatpush2.msra.mxu0 0.0
        %1508 = vmatprep.subr.mxu0 0.0
        %1509 = vmatpush2.msra.mxu0 0.0
        %1510 = vmatprep.subr.mxu0 0.0
        %1511 = vmatpush2.msra.mxu0 0.0
        %1512 = vmatprep.subr.mxu0 0.0
        %1513 = vmatpush2.msra.mxu0 0.0
        %1514 = vmatprep.subr.mxu0 0.0
        %1515 = vmatpush2.msra.mxu0 0.0
        %1516 = vmatprep.subr.mxu0 0.0
        %1517 = vmatpush2.msra.mxu0 0.0
        %1518 = vmatprep.subr.mxu0 0.0
        %1519 = vmatpush2.msra.mxu0 0.0
        %1520 = vmatprep.subr.mxu0 0.0
        %1521 = vmatpush2.msra.mxu0 0.0
        %1522 = vmatprep.subr.mxu0 0.0
        %1523 = vmatpush2.msra.mxu0 0.0
        %1524 = vmatprep.subr.mxu0 0.0
        %1525 = vmatpush2.msra.mxu0 0.0
        %1526 = vmatprep.subr.mxu0 0.0
        %1527 = vmatpush2.msra.mxu0 0.0
        %1528 = vmatprep.subr.mxu0 0.0
        %1529 = vmatpush2.msra.mxu0 0.0
        %1530 = vmatprep.subr.mxu0 0.0
        %1531 = vmatpush2.msra.mxu0 0.0
        %1532 = vmatprep.subr.mxu0 0.0
        %1533 = vmatpush2.msra.mxu0 0.0
        %1534 = vmatprep.subr.mxu0 0.0
        %1535 = vmatpush2.msra.mxu0 0.0
        %1536 = vmatprep.subr.mxu0 0.0
        %1537 = vmatpush2.msra.mxu0 0.0
        %1538 = vmatprep.mubr.f32.mxu0 0.0
        %v1539 = vand.u32 %v610, 4294901760
        %v1540 = vsub.f32 %v610, %v1539
        %v1541 = vand.u32 %v1540, 4294901760
        %1542 = vmatmul.mubr.f32.gmra.mxu0 %v1541
        %v1543 = vpop.f32.mrf.mxu0
        %v1544 = vadd.f32 %v1458, %v1543
        %v1545 = vpop.f32.mrf.mxu0
        %1546 = vmatprep.mubr.f32.mxu0 0.0
        %v1547 = vand.u32 %v613, 4294901760
        %v1548 = vsub.f32 %v613, %v1547
        %v1549 = vand.u32 %v1548, 4294901760
        %1550 = vmatmul.mubr.f32.gmra.mxu0 %v1549
        %v1551 = vpop.f32.mrf.mxu0
        %v1552 = vadd.f32 %v1465, %v1551
        %v1553 = vpop.f32.mrf.mxu0
        %1554 = vdwg.mxu0
        %1555 = vmatprep.subr.mxu0 0.0
        %1556 = vmatpush1.msra.mxu0 0.0
        %1557 = vmatprep.subr.mxu0 0.0
        %1558 = vmatpush1.msra.mxu0 0.0
        %1559 = vmatprep.subr.mxu0 0.0
        %1560 = vmatpush1.msra.mxu0 0.0
        %1561 = vmatprep.subr.mxu0 0.0
        %1562 = vmatpush1.msra.mxu0 0.0
        %1563 = vmatprep.subr.mxu0 0.0
        %1564 = vmatpush1.msra.mxu0 0.0
        %1565 = vmatprep.subr.mxu0 0.0
        %1566 = vmatpush1.msra.mxu0 0.0
        %1567 = vmatprep.subr.mxu0 0.0
        %1568 = vmatpush1.msra.mxu0 0.0
        %1569 = vmatprep.subr.mxu0 0.0
        %1570 = vmatpush1.msra.mxu0 0.0
        %1571 = vmatprep.subr.mxu0 0.0
        %1572 = vmatpush1.msra.mxu0 0.0
        %1573 = vmatprep.subr.mxu0 0.0
        %1574 = vmatpush1.msra.mxu0 0.0
        %1575 = vmatprep.subr.mxu0 0.0
        %v1576 = vand.u32 %v1178, 4294901760
        %v1577 = vsub.f32 %v1178, %v1576
        %v1578 = vand.u32 %v1577, 4294901760
        %1579 = vmatpush1.msra.mxu0 %v1578
        %1580 = vmatprep.subr.mxu0 0.0
        %v1581 = vand.u32 %v1177, 4294901760
        %v1582 = vsub.f32 %v1177, %v1581
        %v1583 = vand.u32 %v1582, 4294901760
        %1584 = vmatpush1.msra.mxu0 %v1583
        %1585 = vmatprep.subr.mxu0 0.0
        %v1586 = vand.u32 %v1176, 4294901760
        %v1587 = vsub.f32 %v1176, %v1586
        %v1588 = vand.u32 %v1587, 4294901760
        %1589 = vmatpush1.msra.mxu0 %v1588
        %1590 = vmatprep.subr.mxu0 0.0
        %v1591 = vand.u32 %v1175, 4294901760
        %v1592 = vsub.f32 %v1175, %v1591
        %v1593 = vand.u32 %v1592, 4294901760
        %1594 = vmatpush1.msra.mxu0 %v1593
        %1595 = vmatprep.subr.mxu0 0.0
        %v1596 = vand.u32 %v1174, 4294901760
        %v1597 = vsub.f32 %v1174, %v1596
        %v1598 = vand.u32 %v1597, 4294901760
        %1599 = vmatpush1.msra.mxu0 %v1598
        %1600 = vmatprep.subr.mxu0 0.0
        %v1601 = vand.u32 %v1173, 4294901760
        %v1602 = vsub.f32 %v1173, %v1601
        %v1603 = vand.u32 %v1602, 4294901760
        %1604 = vmatpush1.msra.mxu0 %v1603
        %1605 = vmatprep.subr.mxu0 0.0
        %1606 = vmatpush2.msra.mxu0 0.0
        %1607 = vmatprep.subr.mxu0 0.0
        %1608 = vmatpush2.msra.mxu0 0.0
        %1609 = vmatprep.subr.mxu0 0.0
        %1610 = vmatpush2.msra.mxu0 0.0
        %1611 = vmatprep.subr.mxu0 0.0
        %1612 = vmatpush2.msra.mxu0 0.0
        %1613 = vmatprep.subr.mxu0 0.0
        %1614 = vmatpush2.msra.mxu0 0.0
        %1615 = vmatprep.subr.mxu0 0.0
        %1616 = vmatpush2.msra.mxu0 0.0
        %1617 = vmatprep.subr.mxu0 0.0
        %1618 = vmatpush2.msra.mxu0 0.0
        %1619 = vmatprep.subr.mxu0 0.0
        %1620 = vmatpush2.msra.mxu0 0.0
        %1621 = vmatprep.subr.mxu0 0.0
        %1622 = vmatpush2.msra.mxu0 0.0
        %1623 = vmatprep.subr.mxu0 0.0
        %1624 = vmatpush2.msra.mxu0 0.0
        %1625 = vmatprep.subr.mxu0 0.0
        %1626 = vmatpush2.msra.mxu0 0.0
        %1627 = vmatprep.subr.mxu0 0.0
        %1628 = vmatpush2.msra.mxu0 0.0
        %1629 = vmatprep.subr.mxu0 0.0
        %1630 = vmatpush2.msra.mxu0 0.0
        %1631 = vmatprep.subr.mxu0 0.0
        %1632 = vmatpush2.msra.mxu0 0.0
        %1633 = vmatprep.subr.mxu0 0.0
        %1634 = vmatpush2.msra.mxu0 0.0
        %1635 = vmatprep.subr.mxu0 0.0
        %1636 = vmatpush2.msra.mxu0 0.0
        %1637 = vmatprep.mubr.f32.mxu0 0.0
        %v1638 = vand.u32 %v610, 4294901760
        %1639 = vmatmul.mubr.f32.gmra.mxu0 %v1638
        %v1640 = vpop.f32.mrf.mxu0
        %v1641 = vadd.f32 %v1544, %v1640
        %v1642 = vpop.f32.mrf.mxu0
        %1643 = vmatprep.mubr.f32.mxu0 0.0
        %v1644 = vand.u32 %v613, 4294901760
        %1645 = vmatmul.mubr.f32.gmra.mxu0 %v1644
        %v1646 = vpop.f32.mrf.mxu0
        %v1647 = vadd.f32 %v1552, %v1646
        %v1648 = vpop.f32.mrf.mxu0
        %1649 = vdwg.mxu0
        %1650 = vmatprep.subr.mxu0 0.0
        %1651 = vmatpush1.msra.mxu0 0.0
        %1652 = vmatprep.subr.mxu0 0.0
        %1653 = vmatpush1.msra.mxu0 0.0
        %1654 = vmatprep.subr.mxu0 0.0
        %1655 = vmatpush1.msra.mxu0 0.0
        %1656 = vmatprep.subr.mxu0 0.0
        %1657 = vmatpush1.msra.mxu0 0.0
        %1658 = vmatprep.subr.mxu0 0.0
        %1659 = vmatpush1.msra.mxu0 0.0
        %1660 = vmatprep.subr.mxu0 0.0
        %1661 = vmatpush1.msra.mxu0 0.0
        %1662 = vmatprep.subr.mxu0 0.0
        %1663 = vmatpush1.msra.mxu0 0.0
        %1664 = vmatprep.subr.mxu0 0.0
        %1665 = vmatpush1.msra.mxu0 0.0
        %1666 = vmatprep.subr.mxu0 0.0
        %1667 = vmatpush1.msra.mxu0 0.0
        %1668 = vmatprep.subr.mxu0 0.0
        %1669 = vmatpush1.msra.mxu0 0.0
        %1670 = vmatprep.subr.mxu0 0.0
        %v1671 = vand.u32 %v1178, 4294901760
        %1672 = vmatpush1.msra.mxu0 %v1671
        %1673 = vmatprep.subr.mxu0 0.0
        %v1674 = vand.u32 %v1177, 4294901760
        %1675 = vmatpush1.msra.mxu0 %v1674
        %1676 = vmatprep.subr.mxu0 0.0
        %v1677 = vand.u32 %v1176, 4294901760
        %1678 = vmatpush1.msra.mxu0 %v1677
        %1679 = vmatprep.subr.mxu0 0.0
        %v1680 = vand.u32 %v1175, 4294901760
        %1681 = vmatpush1.msra.mxu0 %v1680
        %1682 = vmatprep.subr.mxu0 0.0
        %v1683 = vand.u32 %v1174, 4294901760
        %1684 = vmatpush1.msra.mxu0 %v1683
        %1685 = vmatprep.subr.mxu0 0.0
        %v1686 = vand.u32 %v1173, 4294901760
        %1687 = vmatpush1.msra.mxu0 %v1686
        %1688 = vmatprep.subr.mxu0 0.0
        %1689 = vmatpush2.msra.mxu0 0.0
        %1690 = vmatprep.subr.mxu0 0.0
        %1691 = vmatpush2.msra.mxu0 0.0
        %1692 = vmatprep.subr.mxu0 0.0
        %1693 = vmatpush2.msra.mxu0 0.0
        %1694 = vmatprep.subr.mxu0 0.0
        %1695 = vmatpush2.msra.mxu0 0.0
        %1696 = vmatprep.subr.mxu0 0.0
        %1697 = vmatpush2.msra.mxu0 0.0
        %1698 = vmatprep.subr.mxu0 0.0
        %1699 = vmatpush2.msra.mxu0 0.0
        %1700 = vmatprep.subr.mxu0 0.0
        %1701 = vmatpush2.msra.mxu0 0.0
        %1702 = vmatprep.subr.mxu0 0.0
        %1703 = vmatpush2.msra.mxu0 0.0
        %1704 = vmatprep.subr.mxu0 0.0
        %1705 = vmatpush2.msra.mxu0 0.0
        %1706 = vmatprep.subr.mxu0 0.0
        %1707 = vmatpush2.msra.mxu0 0.0
        %1708 = vmatprep.subr.mxu0 0.0
        %1709 = vmatpush2.msra.mxu0 0.0
        %1710 = vmatprep.subr.mxu0 0.0
        %1711 = vmatpush2.msra.mxu0 0.0
        %1712 = vmatprep.subr.mxu0 0.0
        %1713 = vmatpush2.msra.mxu0 0.0
        %1714 = vmatprep.subr.mxu0 0.0
        %1715 = vmatpush2.msra.mxu0 0.0
        %1716 = vmatprep.subr.mxu0 0.0
        %1717 = vmatpush2.msra.mxu0 0.0
        %1718 = vmatprep.subr.mxu0 0.0
        %1719 = vmatpush2.msra.mxu0 0.0
        %1720 = vmatprep.mubr.f32.mxu0 0.0
        %v1721 = vand.u32 %v610, 4294901760
        %1722 = vmatmul.mubr.f32.gmra.mxu0 %v1721
        %v1723 = vpop.f32.mrf.mxu0
        %v1724 = vadd.f32 %v1641, %v1723
        %v1725 = vpop.f32.mrf.mxu0
        %1726 = vmatprep.mubr.f32.mxu0 0.0
        %v1727 = vand.u32 %v613, 4294901760
        %1728 = vmatmul.mubr.f32.gmra.mxu0 %v1727
        %v1729 = vpop.f32.mrf.mxu0
        %v1730 = vadd.f32 %v1647, %v1729
        %v1731 = vpop.f32.mrf.mxu0
        %1732 = vdwg.mxu0
        %v1733 = vmul.f32 %v1724, 0.04
        %v1734 = vmul.f32 %v1730, 0.04
        %1735 = vst [vmem:[%s471 + $0x10] sm:$0xff] %v1733
        %1736 = vst [vmem:[%s471 + $0x18] sm:$0xff] %v1734
        %v1737 = vld [vmem:[#allocation2 + $0x20] sm:$0xff]
        %v1738 = vld [vmem:[#allocation2 + $0x28] sm:$0xff]
        %v1739 = vld [vmem:[#allocation2 + $0x30] sm:$0xff]
        %v1740 = vld [vmem:[#allocation2 + $0x38] sm:$0xff]
        %v1741 = vld [vmem:[#allocation2 + $0x40] sm:$0xff]
        %v1742 = vld [vmem:[#allocation2 + $0x48] sm:$0xff]
        %1743 = vmatprep.subr.mxu0 0.0
        %1744 = vmatpush1.msra.mxu0 0.0
        %1745 = vmatprep.subr.mxu0 0.0
        %1746 = vmatpush1.msra.mxu0 0.0
        %1747 = vmatprep.subr.mxu0 0.0
        %1748 = vmatpush1.msra.mxu0 0.0
        %1749 = vmatprep.subr.mxu0 0.0
        %1750 = vmatpush1.msra.mxu0 0.0
        %1751 = vmatprep.subr.mxu0 0.0
        %1752 = vmatpush1.msra.mxu0 0.0
        %1753 = vmatprep.subr.mxu0 0.0
        %1754 = vmatpush1.msra.mxu0 0.0
        %1755 = vmatprep.subr.mxu0 0.0
        %1756 = vmatpush1.msra.mxu0 0.0
        %1757 = vmatprep.subr.mxu0 0.0
        %1758 = vmatpush1.msra.mxu0 0.0
        %1759 = vmatprep.subr.mxu0 0.0
        %1760 = vmatpush1.msra.mxu0 0.0
        %1761 = vmatprep.subr.mxu0 0.0
        %1762 = vmatpush1.msra.mxu0 0.0
        %1763 = vmatprep.subr.mxu0 0.0
        %v1764 = vand.u32 %v1742, 4294901760
        %1765 = vmatpush1.msra.mxu0 %v1764
        %1766 = vmatprep.subr.mxu0 0.0
        %v1767 = vand.u32 %v1741, 4294901760
        %1768 = vmatpush1.msra.mxu0 %v1767
        %1769 = vmatprep.subr.mxu0 0.0
        %v1770 = vand.u32 %v1740, 4294901760
        %1771 = vmatpush1.msra.mxu0 %v1770
        %1772 = vmatprep.subr.mxu0 0.0
        %v1773 = vand.u32 %v1739, 4294901760
        %1774 = vmatpush1.msra.mxu0 %v1773
        %1775 = vmatprep.subr.mxu0 0.0
        %v1776 = vand.u32 %v1738, 4294901760
        %1777 = vmatpush1.msra.mxu0 %v1776
        %1778 = vmatprep.subr.mxu0 0.0
        %v1779 = vand.u32 %v1737, 4294901760
        %1780 = vmatpush1.msra.mxu0 %v1779
        %1781 = vmatprep.subr.mxu0 0.0
        %1782 = vmatpush2.msra.mxu0 0.0
        %1783 = vmatprep.subr.mxu0 0.0
        %1784 = vmatpush2.msra.mxu0 0.0
        %1785 = vmatprep.subr.mxu0 0.0
        %1786 = vmatpush2.msra.mxu0 0.0
        %1787 = vmatprep.subr.mxu0 0.0
        %1788 = vmatpush2.msra.mxu0 0.0
        %1789 = vmatprep.subr.mxu0 0.0
        %1790 = vmatpush2.msra.mxu0 0.0
        %1791 = vmatprep.subr.mxu0 0.0
        %1792 = vmatpush2.msra.mxu0 0.0
        %1793 = vmatprep.subr.mxu0 0.0
        %1794 = vmatpush2.msra.mxu0 0.0
        %1795 = vmatprep.subr.mxu0 0.0
        %1796 = vmatpush2.msra.mxu0 0.0
        %1797 = vmatprep.subr.mxu0 0.0
        %1798 = vmatpush2.msra.mxu0 0.0
        %1799 = vmatprep.subr.mxu0 0.0
        %1800 = vmatpush2.msra.mxu0 0.0
        %1801 = vmatprep.subr.mxu0 0.0
        %1802 = vmatpush2.msra.mxu0 0.0
        %1803 = vmatprep.subr.mxu0 0.0
        %1804 = vmatpush2.msra.mxu0 0.0
        %1805 = vmatprep.subr.mxu0 0.0
        %1806 = vmatpush2.msra.mxu0 0.0
        %1807 = vmatprep.subr.mxu0 0.0
        %1808 = vmatpush2.msra.mxu0 0.0
        %1809 = vmatprep.subr.mxu0 0.0
        %1810 = vmatpush2.msra.mxu0 0.0
        %1811 = vmatprep.subr.mxu0 0.0
        %1812 = vmatpush2.msra.mxu0 0.0
        %1813 = vmatprep.mubr.f32.mxu0 0.0
        %v1814 = vand.u32 %v610, 4294901760
        %v1815 = vsub.f32 %v610, %v1814
        %v1816 = vand.u32 %v1815, 4294901760
        %v1817 = vsub.f32 %v1815, %v1816
        %v1818 = vand.u32 %v1817, 4294901760
        %1819 = vmatmul.mubr.f32.gmra.mxu0 %v1818
        %v1820 = vpop.f32.mrf.mxu0
        %v1821 = vadd.f32 0.0, %v1820
        %v1822 = vpop.f32.mrf.mxu0
        %1823 = vmatprep.mubr.f32.mxu0 0.0
        %v1824 = vand.u32 %v613, 4294901760
        %v1825 = vsub.f32 %v613, %v1824
        %v1826 = vand.u32 %v1825, 4294901760
        %v1827 = vsub.f32 %v1825, %v1826
        %v1828 = vand.u32 %v1827, 4294901760
        %1829 = vmatmul.mubr.f32.gmra.mxu0 %v1828
        %v1830 = vpop.f32.mrf.mxu0
        %v1831 = vadd.f32 0.0, %v1830
        %v1832 = vpop.f32.mrf.mxu0
        %1833 = vdwg.mxu0
        %1834 = vmatprep.subr.mxu0 0.0
        %1835 = vmatpush1.msra.mxu0 0.0
        %1836 = vmatprep.subr.mxu0 0.0
        %1837 = vmatpush1.msra.mxu0 0.0
        %1838 = vmatprep.subr.mxu0 0.0
        %1839 = vmatpush1.msra.mxu0 0.0
        %1840 = vmatprep.subr.mxu0 0.0
        %1841 = vmatpush1.msra.mxu0 0.0
        %1842 = vmatprep.subr.mxu0 0.0
        %1843 = vmatpush1.msra.mxu0 0.0
        %1844 = vmatprep.subr.mxu0 0.0
        %1845 = vmatpush1.msra.mxu0 0.0
        %1846 = vmatprep.subr.mxu0 0.0
        %1847 = vmatpush1.msra.mxu0 0.0
        %1848 = vmatprep.subr.mxu0 0.0
        %1849 = vmatpush1.msra.mxu0 0.0
        %1850 = vmatprep.subr.mxu0 0.0
        %1851 = vmatpush1.msra.mxu0 0.0
        %1852 = vmatprep.subr.mxu0 0.0
        %1853 = vmatpush1.msra.mxu0 0.0
        %1854 = vmatprep.subr.mxu0 0.0
        %v1855 = vand.u32 %v1742, 4294901760
        %v1856 = vsub.f32 %v1742, %v1855
        %v1857 = vand.u32 %v1856, 4294901760
        %v1858 = vsub.f32 %v1856, %v1857
        %v1859 = vand.u32 %v1858, 4294901760
        %1860 = vmatpush1.msra.mxu0 %v1859
        %1861 = vmatprep.subr.mxu0 0.0
        %v1862 = vand.u32 %v1741, 4294901760
        %v1863 = vsub.f32 %v1741, %v1862
        %v1864 = vand.u32 %v1863, 4294901760
        %v1865 = vsub.f32 %v1863, %v1864
        %v1866 = vand.u32 %v1865, 4294901760
        %1867 = vmatpush1.msra.mxu0 %v1866
        %1868 = vmatprep.subr.mxu0 0.0
        %v1869 = vand.u32 %v1740, 4294901760
        %v1870 = vsub.f32 %v1740, %v1869
        %v1871 = vand.u32 %v1870, 4294901760
        %v1872 = vsub.f32 %v1870, %v1871
        %v1873 = vand.u32 %v1872, 4294901760
        %1874 = vmatpush1.msra.mxu0 %v1873
        %1875 = vmatprep.subr.mxu0 0.0
        %v1876 = vand.u32 %v1739, 4294901760
        %v1877 = vsub.f32 %v1739, %v1876
        %v1878 = vand.u32 %v1877, 4294901760
        %v1879 = vsub.f32 %v1877, %v1878
        %v1880 = vand.u32 %v1879, 4294901760
        %1881 = vmatpush1.msra.mxu0 %v1880
        %1882 = vmatprep.subr.mxu0 0.0
        %v1883 = vand.u32 %v1738, 4294901760
        %v1884 = vsub.f32 %v1738, %v1883
        %v1885 = vand.u32 %v1884, 4294901760
        %v1886 = vsub.f32 %v1884, %v1885
        %v1887 = vand.u32 %v1886, 4294901760
        %1888 = vmatpush1.msra.mxu0 %v1887
        %1889 = vmatprep.subr.mxu0 0.0
        %v1890 = vand.u32 %v1737, 4294901760
        %v1891 = vsub.f32 %v1737, %v1890
        %v1892 = vand.u32 %v1891, 4294901760
        %v1893 = vsub.f32 %v1891, %v1892
        %v1894 = vand.u32 %v1893, 4294901760
        %1895 = vmatpush1.msra.mxu0 %v1894
        %1896 = vmatprep.subr.mxu0 0.0
        %1897 = vmatpush2.msra.mxu0 0.0
        %1898 = vmatprep.subr.mxu0 0.0
        %1899 = vmatpush2.msra.mxu0 0.0
        %1900 = vmatprep.subr.mxu0 0.0
        %1901 = vmatpush2.msra.mxu0 0.0
        %1902 = vmatprep.subr.mxu0 0.0
        %1903 = vmatpush2.msra.mxu0 0.0
        %1904 = vmatprep.subr.mxu0 0.0
        %1905 = vmatpush2.msra.mxu0 0.0
        %1906 = vmatprep.subr.mxu0 0.0
        %1907 = vmatpush2.msra.mxu0 0.0
        %1908 = vmatprep.subr.mxu0 0.0
        %1909 = vmatpush2.msra.mxu0 0.0
        %1910 = vmatprep.subr.mxu0 0.0
        %1911 = vmatpush2.msra.mxu0 0.0
        %1912 = vmatprep.subr.mxu0 0.0
        %1913 = vmatpush2.msra.mxu0 0.0
        %1914 = vmatprep.subr.mxu0 0.0
        %1915 = vmatpush2.msra.mxu0 0.0
        %1916 = vmatprep.subr.mxu0 0.0
        %1917 = vmatpush2.msra.mxu0 0.0
        %1918 = vmatprep.subr.mxu0 0.0
        %1919 = vmatpush2.msra.mxu0 0.0
        %1920 = vmatprep.subr.mxu0 0.0
        %1921 = vmatpush2.msra.mxu0 0.0
        %1922 = vmatprep.subr.mxu0 0.0
        %1923 = vmatpush2.msra.mxu0 0.0
        %1924 = vmatprep.subr.mxu0 0.0
        %1925 = vmatpush2.msra.mxu0 0.0
        %1926 = vmatprep.subr.mxu0 0.0
        %1927 = vmatpush2.msra.mxu0 0.0
        %1928 = vmatprep.mubr.f32.mxu0 0.0
        %v1929 = vand.u32 %v610, 4294901760
        %1930 = vmatmul.mubr.f32.gmra.mxu0 %v1929
        %v1931 = vpop.f32.mrf.mxu0
        %v1932 = vadd.f32 %v1821, %v1931
        %v1933 = vpop.f32.mrf.mxu0
        %1934 = vmatprep.mubr.f32.mxu0 0.0
        %v1935 = vand.u32 %v613, 4294901760
        %1936 = vmatmul.mubr.f32.gmra.mxu0 %v1935
        %v1937 = vpop.f32.mrf.mxu0
        %v1938 = vadd.f32 %v1831, %v1937
        %v1939 = vpop.f32.mrf.mxu0
        %1940 = vdwg.mxu0
        %1941 = vmatprep.subr.mxu0 0.0
        %1942 = vmatpush1.msra.mxu0 0.0
        %1943 = vmatprep.subr.mxu0 0.0
        %1944 = vmatpush1.msra.mxu0 0.0
        %1945 = vmatprep.subr.mxu0 0.0
        %1946 = vmatpush1.msra.mxu0 0.0
        %1947 = vmatprep.subr.mxu0 0.0
        %1948 = vmatpush1.msra.mxu0 0.0
        %1949 = vmatprep.subr.mxu0 0.0
        %1950 = vmatpush1.msra.mxu0 0.0
        %1951 = vmatprep.subr.mxu0 0.0
        %1952 = vmatpush1.msra.mxu0 0.0
        %1953 = vmatprep.subr.mxu0 0.0
        %1954 = vmatpush1.msra.mxu0 0.0
        %1955 = vmatprep.subr.mxu0 0.0
        %1956 = vmatpush1.msra.mxu0 0.0
        %1957 = vmatprep.subr.mxu0 0.0
        %1958 = vmatpush1.msra.mxu0 0.0
        %1959 = vmatprep.subr.mxu0 0.0
        %1960 = vmatpush1.msra.mxu0 0.0
        %1961 = vmatprep.subr.mxu0 0.0
        %v1962 = vand.u32 %v1742, 4294901760
        %v1963 = vsub.f32 %v1742, %v1962
        %1964 = vmatpush1.msra.mxu0 %v1963
        %1965 = vmatprep.subr.mxu0 0.0
        %v1966 = vand.u32 %v1741, 4294901760
        %v1967 = vsub.f32 %v1741, %v1966
        %1968 = vmatpush1.msra.mxu0 %v1967
        %1969 = vmatprep.subr.mxu0 0.0
        %v1970 = vand.u32 %v1740, 4294901760
        %v1971 = vsub.f32 %v1740, %v1970
        %1972 = vmatpush1.msra.mxu0 %v1971
        %1973 = vmatprep.subr.mxu0 0.0
        %v1974 = vand.u32 %v1739, 4294901760
        %v1975 = vsub.f32 %v1739, %v1974
        %1976 = vmatpush1.msra.mxu0 %v1975
        %1977 = vmatprep.subr.mxu0 0.0
        %v1978 = vand.u32 %v1738, 4294901760
        %v1979 = vsub.f32 %v1738, %v1978
        %1980 = vmatpush1.msra.mxu0 %v1979
        %1981 = vmatprep.subr.mxu0 0.0
        %v1982 = vand.u32 %v1737, 4294901760
        %v1983 = vsub.f32 %v1737, %v1982
        %1984 = vmatpush1.msra.mxu0 %v1983
        %1985 = vmatprep.subr.mxu0 0.0
        %1986 = vmatpush2.msra.mxu0 0.0
        %1987 = vmatprep.subr.mxu0 0.0
        %1988 = vmatpush2.msra.mxu0 0.0
        %1989 = vmatprep.subr.mxu0 0.0
        %1990 = vmatpush2.msra.mxu0 0.0
        %1991 = vmatprep.subr.mxu0 0.0
        %1992 = vmatpush2.msra.mxu0 0.0
        %1993 = vmatprep.subr.mxu0 0.0
        %1994 = vmatpush2.msra.mxu0 0.0
        %1995 = vmatprep.subr.mxu0 0.0
        %1996 = vmatpush2.msra.mxu0 0.0
        %1997 = vmatprep.subr.mxu0 0.0
        %1998 = vmatpush2.msra.mxu0 0.0
        %1999 = vmatprep.subr.mxu0 0.0
        %2000 = vmatpush2.msra.mxu0 0.0
        %2001 = vmatprep.subr.mxu0 0.0
        %2002 = vmatpush2.msra.mxu0 0.0
        %2003 = vmatprep.subr.mxu0 0.0
        %2004 = vmatpush2.msra.mxu0 0.0
        %2005 = vmatprep.subr.mxu0 0.0
        %2006 = vmatpush2.msra.mxu0 0.0
        %2007 = vmatprep.subr.mxu0 0.0
        %2008 = vmatpush2.msra.mxu0 0.0
        %2009 = vmatprep.subr.mxu0 0.0
        %2010 = vmatpush2.msra.mxu0 0.0
        %2011 = vmatprep.subr.mxu0 0.0
        %2012 = vmatpush2.msra.mxu0 0.0
        %2013 = vmatprep.subr.mxu0 0.0
        %2014 = vmatpush2.msra.mxu0 0.0
        %2015 = vmatprep.subr.mxu0 0.0
        %2016 = vmatpush2.msra.mxu0 0.0
        %2017 = vmatprep.mubr.f32.mxu0 0.0
        %v2018 = vand.u32 %v610, 4294901760
        %v2019 = vsub.f32 %v610, %v2018
        %2020 = vmatmul.mubr.f32.gmra.mxu0 %v2019
        %v2021 = vpop.f32.mrf.mxu0
        %v2022 = vadd.f32 %v1932, %v2021
        %v2023 = vpop.f32.mrf.mxu0
        %2024 = vmatprep.mubr.f32.mxu0 0.0
        %v2025 = vand.u32 %v613, 4294901760
        %v2026 = vsub.f32 %v613, %v2025
        %2027 = vmatmul.mubr.f32.gmra.mxu0 %v2026
        %v2028 = vpop.f32.mrf.mxu0
        %v2029 = vadd.f32 %v1938, %v2028
        %v2030 = vpop.f32.mrf.mxu0
        %2031 = vdwg.mxu0
        %2032 = vmatprep.subr.mxu0 0.0
        %2033 = vmatpush1.msra.mxu0 0.0
        %2034 = vmatprep.subr.mxu0 0.0
        %2035 = vmatpush1.msra.mxu0 0.0
        %2036 = vmatprep.subr.mxu0 0.0
        %2037 = vmatpush1.msra.mxu0 0.0
        %2038 = vmatprep.subr.mxu0 0.0
        %2039 = vmatpush1.msra.mxu0 0.0
        %2040 = vmatprep.subr.mxu0 0.0
        %2041 = vmatpush1.msra.mxu0 0.0
        %2042 = vmatprep.subr.mxu0 0.0
        %2043 = vmatpush1.msra.mxu0 0.0
        %2044 = vmatprep.subr.mxu0 0.0
        %2045 = vmatpush1.msra.mxu0 0.0
        %2046 = vmatprep.subr.mxu0 0.0
        %2047 = vmatpush1.msra.mxu0 0.0
        %2048 = vmatprep.subr.mxu0 0.0
        %2049 = vmatpush1.msra.mxu0 0.0
        %2050 = vmatprep.subr.mxu0 0.0
        %2051 = vmatpush1.msra.mxu0 0.0
        %2052 = vmatprep.subr.mxu0 0.0
        %v2053 = vand.u32 %v1742, 4294901760
        %2054 = vmatpush1.msra.mxu0 %v2053
        %2055 = vmatprep.subr.mxu0 0.0
        %v2056 = vand.u32 %v1741, 4294901760
        %2057 = vmatpush1.msra.mxu0 %v2056
        %2058 = vmatprep.subr.mxu0 0.0
        %v2059 = vand.u32 %v1740, 4294901760
        %2060 = vmatpush1.msra.mxu0 %v2059
        %2061 = vmatprep.subr.mxu0 0.0
        %v2062 = vand.u32 %v1739, 4294901760
        %2063 = vmatpush1.msra.mxu0 %v2062
        %2064 = vmatprep.subr.mxu0 0.0
        %v2065 = vand.u32 %v1738, 4294901760
        %2066 = vmatpush1.msra.mxu0 %v2065
        %2067 = vmatprep.subr.mxu0 0.0
        %v2068 = vand.u32 %v1737, 4294901760
        %2069 = vmatpush1.msra.mxu0 %v2068
        %2070 = vmatprep.subr.mxu0 0.0
        %2071 = vmatpush2.msra.mxu0 0.0
        %2072 = vmatprep.subr.mxu0 0.0
        %2073 = vmatpush2.msra.mxu0 0.0
        %2074 = vmatprep.subr.mxu0 0.0
        %2075 = vmatpush2.msra.mxu0 0.0
        %2076 = vmatprep.subr.mxu0 0.0
        %2077 = vmatpush2.msra.mxu0 0.0
        %2078 = vmatprep.subr.mxu0 0.0
        %2079 = vmatpush2.msra.mxu0 0.0
        %2080 = vmatprep.subr.mxu0 0.0
        %2081 = vmatpush2.msra.mxu0 0.0
        %2082 = vmatprep.subr.mxu0 0.0
        %2083 = vmatpush2.msra.mxu0 0.0
        %2084 = vmatprep.subr.mxu0 0.0
        %2085 = vmatpush2.msra.mxu0 0.0
        %2086 = vmatprep.subr.mxu0 0.0
        %2087 = vmatpush2.msra.mxu0 0.0
        %2088 = vmatprep.subr.mxu0 0.0
        %2089 = vmatpush2.msra.mxu0 0.0
        %2090 = vmatprep.subr.mxu0 0.0
        %2091 = vmatpush2.msra.mxu0 0.0
        %2092 = vmatprep.subr.mxu0 0.0
        %2093 = vmatpush2.msra.mxu0 0.0
        %2094 = vmatprep.subr.mxu0 0.0
        %2095 = vmatpush2.msra.mxu0 0.0
        %2096 = vmatprep.subr.mxu0 0.0
        %2097 = vmatpush2.msra.mxu0 0.0
        %2098 = vmatprep.subr.mxu0 0.0
        %2099 = vmatpush2.msra.mxu0 0.0
        %2100 = vmatprep.subr.mxu0 0.0
        %2101 = vmatpush2.msra.mxu0 0.0
        %2102 = vmatprep.mubr.f32.mxu0 0.0
        %v2103 = vand.u32 %v610, 4294901760
        %v2104 = vsub.f32 %v610, %v2103
        %v2105 = vand.u32 %v2104, 4294901760
        %2106 = vmatmul.mubr.f32.gmra.mxu0 %v2105
        %v2107 = vpop.f32.mrf.mxu0
        %v2108 = vadd.f32 %v2022, %v2107
        %v2109 = vpop.f32.mrf.mxu0
        %2110 = vmatprep.mubr.f32.mxu0 0.0
        %v2111 = vand.u32 %v613, 4294901760
        %v2112 = vsub.f32 %v613, %v2111
        %v2113 = vand.u32 %v2112, 4294901760
        %2114 = vmatmul.mubr.f32.gmra.mxu0 %v2113
        %v2115 = vpop.f32.mrf.mxu0
        %v2116 = vadd.f32 %v2029, %v2115
        %v2117 = vpop.f32.mrf.mxu0
        %2118 = vdwg.mxu0
        %2119 = vmatprep.subr.mxu0 0.0
        %2120 = vmatpush1.msra.mxu0 0.0
        %2121 = vmatprep.subr.mxu0 0.0
        %2122 = vmatpush1.msra.mxu0 0.0
        %2123 = vmatprep.subr.mxu0 0.0
        %2124 = vmatpush1.msra.mxu0 0.0
        %2125 = vmatprep.subr.mxu0 0.0
        %2126 = vmatpush1.msra.mxu0 0.0
        %2127 = vmatprep.subr.mxu0 0.0
        %2128 = vmatpush1.msra.mxu0 0.0
        %2129 = vmatprep.subr.mxu0 0.0
        %2130 = vmatpush1.msra.mxu0 0.0
        %2131 = vmatprep.subr.mxu0 0.0
        %2132 = vmatpush1.msra.mxu0 0.0
        %2133 = vmatprep.subr.mxu0 0.0
        %2134 = vmatpush1.msra.mxu0 0.0
        %2135 = vmatprep.subr.mxu0 0.0
        %2136 = vmatpush1.msra.mxu0 0.0
        %2137 = vmatprep.subr.mxu0 0.0
        %2138 = vmatpush1.msra.mxu0 0.0
        %2139 = vmatprep.subr.mxu0 0.0
        %v2140 = vand.u32 %v1742, 4294901760
        %v2141 = vsub.f32 %v1742, %v2140
        %v2142 = vand.u32 %v2141, 4294901760
        %2143 = vmatpush1.msra.mxu0 %v2142
        %2144 = vmatprep.subr.mxu0 0.0
        %v2145 = vand.u32 %v1741, 4294901760
        %v2146 = vsub.f32 %v1741, %v2145
        %v2147 = vand.u32 %v2146, 4294901760
        %2148 = vmatpush1.msra.mxu0 %v2147
        %2149 = vmatprep.subr.mxu0 0.0
        %v2150 = vand.u32 %v1740, 4294901760
        %v2151 = vsub.f32 %v1740, %v2150
        %v2152 = vand.u32 %v2151, 4294901760
        %2153 = vmatpush1.msra.mxu0 %v2152
        %2154 = vmatprep.subr.mxu0 0.0
        %v2155 = vand.u32 %v1739, 4294901760
        %v2156 = vsub.f32 %v1739, %v2155
        %v2157 = vand.u32 %v2156, 4294901760
        %2158 = vmatpush1.msra.mxu0 %v2157
        %2159 = vmatprep.subr.mxu0 0.0
        %v2160 = vand.u32 %v1738, 4294901760
        %v2161 = vsub.f32 %v1738, %v2160
        %v2162 = vand.u32 %v2161, 4294901760
        %2163 = vmatpush1.msra.mxu0 %v2162
        %2164 = vmatprep.subr.mxu0 0.0
        %v2165 = vand.u32 %v1737, 4294901760
        %v2166 = vsub.f32 %v1737, %v2165
        %v2167 = vand.u32 %v2166, 4294901760
        %2168 = vmatpush1.msra.mxu0 %v2167
        %2169 = vmatprep.subr.mxu0 0.0
        %2170 = vmatpush2.msra.mxu0 0.0
        %2171 = vmatprep.subr.mxu0 0.0
        %2172 = vmatpush2.msra.mxu0 0.0
        %2173 = vmatprep.subr.mxu0 0.0
        %2174 = vmatpush2.msra.mxu0 0.0
        %2175 = vmatprep.subr.mxu0 0.0
        %2176 = vmatpush2.msra.mxu0 0.0
        %2177 = vmatprep.subr.mxu0 0.0
        %2178 = vmatpush2.msra.mxu0 0.0
        %2179 = vmatprep.subr.mxu0 0.0
        %2180 = vmatpush2.msra.mxu0 0.0
        %2181 = vmatprep.subr.mxu0 0.0
        %2182 = vmatpush2.msra.mxu0 0.0
        %2183 = vmatprep.subr.mxu0 0.0
        %2184 = vmatpush2.msra.mxu0 0.0
        %2185 = vmatprep.subr.mxu0 0.0
        %2186 = vmatpush2.msra.mxu0 0.0
        %2187 = vmatprep.subr.mxu0 0.0
        %2188 = vmatpush2.msra.mxu0 0.0
        %2189 = vmatprep.subr.mxu0 0.0
        %2190 = vmatpush2.msra.mxu0 0.0
        %2191 = vmatprep.subr.mxu0 0.0
        %2192 = vmatpush2.msra.mxu0 0.0
        %2193 = vmatprep.subr.mxu0 0.0
        %2194 = vmatpush2.msra.mxu0 0.0
        %2195 = vmatprep.subr.mxu0 0.0
        %2196 = vmatpush2.msra.mxu0 0.0
        %2197 = vmatprep.subr.mxu0 0.0
        %2198 = vmatpush2.msra.mxu0 0.0
        %2199 = vmatprep.subr.mxu0 0.0
        %2200 = vmatpush2.msra.mxu0 0.0
        %2201 = vmatprep.mubr.f32.mxu0 0.0
        %v2202 = vand.u32 %v610, 4294901760
        %2203 = vmatmul.mubr.f32.gmra.mxu0 %v2202
        %v2204 = vpop.f32.mrf.mxu0
        %v2205 = vadd.f32 %v2108, %v2204
        %v2206 = vpop.f32.mrf.mxu0
        %2207 = vmatprep.mubr.f32.mxu0 0.0
        %v2208 = vand.u32 %v613, 4294901760
        %2209 = vmatmul.mubr.f32.gmra.mxu0 %v2208
        %v2210 = vpop.f32.mrf.mxu0
        %v2211 = vadd.f32 %v2116, %v2210
        %v2212 = vpop.f32.mrf.mxu0
        %2213 = vdwg.mxu0
        %2214 = vmatprep.subr.mxu0 0.0
        %2215 = vmatpush1.msra.mxu0 0.0
        %2216 = vmatprep.subr.mxu0 0.0
        %2217 = vmatpush1.msra.mxu0 0.0
        %2218 = vmatprep.subr.mxu0 0.0
        %2219 = vmatpush1.msra.mxu0 0.0
        %2220 = vmatprep.subr.mxu0 0.0
        %2221 = vmatpush1.msra.mxu0 0.0
        %2222 = vmatprep.subr.mxu0 0.0
        %2223 = vmatpush1.msra.mxu0 0.0
        %2224 = vmatprep.subr.mxu0 0.0
        %2225 = vmatpush1.msra.mxu0 0.0
        %2226 = vmatprep.subr.mxu0 0.0
        %2227 = vmatpush1.msra.mxu0 0.0
        %2228 = vmatprep.subr.mxu0 0.0
        %2229 = vmatpush1.msra.mxu0 0.0
        %2230 = vmatprep.subr.mxu0 0.0
        %2231 = vmatpush1.msra.mxu0 0.0
        %2232 = vmatprep.subr.mxu0 0.0
        %2233 = vmatpush1.msra.mxu0 0.0
        %2234 = vmatprep.subr.mxu0 0.0
        %v2235 = vand.u32 %v1742, 4294901760
        %2236 = vmatpush1.msra.mxu0 %v2235
        %2237 = vmatprep.subr.mxu0 0.0
        %v2238 = vand.u32 %v1741, 4294901760
        %2239 = vmatpush1.msra.mxu0 %v2238
        %2240 = vmatprep.subr.mxu0 0.0
        %v2241 = vand.u32 %v1740, 4294901760
        %2242 = vmatpush1.msra.mxu0 %v2241
        %2243 = vmatprep.subr.mxu0 0.0
        %v2244 = vand.u32 %v1739, 4294901760
        %2245 = vmatpush1.msra.mxu0 %v2244
        %2246 = vmatprep.subr.mxu0 0.0
        %v2247 = vand.u32 %v1738, 4294901760
        %2248 = vmatpush1.msra.mxu0 %v2247
        %2249 = vmatprep.subr.mxu0 0.0
        %v2250 = vand.u32 %v1737, 4294901760
        %2251 = vmatpush1.msra.mxu0 %v2250
        %2252 = vmatprep.subr.mxu0 0.0
        %2253 = vmatpush2.msra.mxu0 0.0
        %2254 = vmatprep.subr.mxu0 0.0
        %2255 = vmatpush2.msra.mxu0 0.0
        %2256 = vmatprep.subr.mxu0 0.0
        %2257 = vmatpush2.msra.mxu0 0.0
        %2258 = vmatprep.subr.mxu0 0.0
        %2259 = vmatpush2.msra.mxu0 0.0
        %2260 = vmatprep.subr.mxu0 0.0
        %2261 = vmatpush2.msra.mxu0 0.0
        %2262 = vmatprep.subr.mxu0 0.0
        %2263 = vmatpush2.msra.mxu0 0.0
        %2264 = vmatprep.subr.mxu0 0.0
        %2265 = vmatpush2.msra.mxu0 0.0
        %2266 = vmatprep.subr.mxu0 0.0
        %2267 = vmatpush2.msra.mxu0 0.0
        %2268 = vmatprep.subr.mxu0 0.0
        %2269 = vmatpush2.msra.mxu0 0.0
        %2270 = vmatprep.subr.mxu0 0.0
        %2271 = vmatpush2.msra.mxu0 0.0
        %2272 = vmatprep.subr.mxu0 0.0
        %2273 = vmatpush2.msra.mxu0 0.0
        %2274 = vmatprep.subr.mxu0 0.0
        %2275 = vmatpush2.msra.mxu0 0.0
        %2276 = vmatprep.subr.mxu0 0.0
        %2277 = vmatpush2.msra.mxu0 0.0
        %2278 = vmatprep.subr.mxu0 0.0
        %2279 = vmatpush2.msra.mxu0 0.0
        %2280 = vmatprep.subr.mxu0 0.0
        %2281 = vmatpush2.msra.mxu0 0.0
        %2282 = vmatprep.subr.mxu0 0.0
        %2283 = vmatpush2.msra.mxu0 0.0
        %2284 = vmatprep.mubr.f32.mxu0 0.0
        %v2285 = vand.u32 %v610, 4294901760
        %2286 = vmatmul.mubr.f32.gmra.mxu0 %v2285
        %v2287 = vpop.f32.mrf.mxu0
        %v2288 = vadd.f32 %v2205, %v2287
        %v2289 = vpop.f32.mrf.mxu0
        %2290 = vmatprep.mubr.f32.mxu0 0.0
        %v2291 = vand.u32 %v613, 4294901760
        %2292 = vmatmul.mubr.f32.gmra.mxu0 %v2291
        %v2293 = vpop.f32.mrf.mxu0
        %v2294 = vadd.f32 %v2211, %v2293
        %v2295 = vpop.f32.mrf.mxu0
        %2296 = vdwg.mxu0
        %v2297 = vmul.f32 %v2288, 0.04
        %v2298 = vmul.f32 %v2294, 0.04
        %2299 = vst [vmem:[%s471 + $0x20] sm:$0xff] %v2297
        %2300 = vst [vmem:[%s471 + $0x28] sm:$0xff] %v2298
        %s2301 = sand.u32 %s222, 1
        %s2302 = scalar_lea.sflag [#allocation5], %s2301
        %s2303 = sand.u32 %s222, 1
        %s2304 = smul.addr %s2303, 48
        %s2305 = scalar_lea.vmem [#allocation12], %s2304
        // Predicated region
        $region65: #{tpu_custom_call.1} parent=43 // pred_check
          %p2306 = pneg %p232
        $region66: #{tpu_custom_call.1} parent=43 // pred_check_branch
          %2308 = sbr.rel (%p2306) target = $region68
        $region67: #{tpu_custom_call.1} parent=43 // pred_region
          %s2309 = smul.u32 6, %s32
          %s2310 = ssub.s32 25, %s2309
          %p2311 = scmp.lt.s32.totalorder %s2310, 6
          %s2312 = scalar_select %p2311, %s2310, 6
          %s2313 = smul.u32 128, %s2312
          %s2315 = ssub.s32 768, %s2313
          %2316 = vsyncadd %s2302, %s2315
          %p2317 = scmp.ne.s32.totalorder 0, %s2313
          %s2318 = smul.addr %s31, 25
          %s2319 = sadd.s32 %s2309, %s2318
          %s2320 = smul.addr %s2319, 128
          %s2321 = scalar_lea.hbm %s6, %s2320
          %s2322 = smul.u32 8, %s2312
          %s2323 = sshll.u32 %s2305, 4
          %s2324 = int_to_ptr.vmem [resolvable:$true] %s2323
          %s2325 = sshll.u32 %s2322, 4
          %2329 = dma.vmem_to_hbm [thread:$0]  (%p2317), %s2324, %s2325, %s2321, %s2302, 128, 128, 8
        $region68: #{tpu_custom_call.1} parent=43 // pred_fallthru
          _
      $region44: #{tpu_custom_call.1} parent=5 // pred_fallthru
        _
      %p2330 = scmp.le.s32.totalorder 2, %s22
      // Predicated region
      $region69: #{tpu_custom_call.1} parent=5 // pred_check
        %p2331 = pneg %p2330
      $region70: #{tpu_custom_call.1} parent=5 // pred_check_branch
        %2333 = sbr.rel (%p2331) target = $region72
      $region71: #{tpu_custom_call.1} parent=5 // pred_region
        %s2334 = ssub.s32 %s22, 2
        // Predicated region
        $region73: #{tpu_custom_call.1} parent=71 // pred_check
          %p2335 = pneg %p238
        $region74: #{tpu_custom_call.1} parent=71 // pred_check_branch
          %2337 = sbr.rel (%p2335) target = $region76
        $region75: #{tpu_custom_call.1} parent=71 // pred_region
          %s2338 = sand.u32 %s223, 1
          %s2339 = scalar_lea.sflag [#allocation5], %s2338
          %s2340 = sand.u32 %s223, 1
          %s2341 = smul.addr %s2340, 48
          %s2342 = scalar_lea.vmem [#allocation12], %s2341
          %2343 = dma.done %s2339, 768
        $region76: #{tpu_custom_call.1} parent=71 // pred_fallthru
          _
      $region72: #{tpu_custom_call.1} parent=5 // pred_fallthru
        _
    $region6: #{tpu_custom_call.1} parent=1 // loop_footer
      %s26 = sadd.s32 1, %s22
    $region7: #{tpu_custom_call.1} parent=1 // loop_footer_branch
      %21 = sbr.rel target = $region3
    $region8: #{tpu_custom_call.1} parent=1 // loop_exit
      _
    %2344 = vsyncpa [#allocation4], 1
    %s2345 = scalar_lea.sflag [#allocation4], 1
    %2346 = vsyncpa %s2345, 1
    %2347 = vsyncpa [#allocation7], 1
    %s2348 = scalar_lea.sflag [#allocation7], 1
    %2349 = vsyncpa %s2348, 1
    %2350 = vsyncpa [#allocation10], 1
    %s2351 = scalar_lea.sflag [#allocation10], 1
    %2352 = vsyncpa %s2351, 1
    %2353 = vsyncpa [#allocation5], 1
    %s2354 = scalar_lea.sflag [#allocation5], 1
    %2355 = vsyncpa %s2354, 1

</llo_original>
